<compile_context>
chip_gen: v6e
topology: v6e:2x2x1
jax: 0.10.0
libtpu: 0.0.40
codegen_flags: <defaults>
</compile_context>

<pallas_src>
import functools
import math

import jax
import jax.numpy as jnp
from jax import lax
from jax.experimental import pallas as pl
from jax.experimental.pallas import tpu as pltpu

# Model hyper-parameters (match the PyTorch module defaults).
AUDIO_IN = 23
LANDMARK_IN = 60              # 3 * 20 after flattening
HIDDEN = 64                   # lstm_hidden_size
NUM_HEADS = 2
HEAD_DIM = HIDDEN // NUM_HEADS
NUM_CLASSES = 2

H2 = 2 * HIDDEN               # concatenated hidden (audio | landmark) = 128
G8 = 8 * HIDDEN               # concatenated gate width = 512


def _mm_lstm_kernel(
    x_ref,            # (T_max*B_pad, AUDIO_IN+LANDMARK_IN) time-major inputs
    wih_ref,          # (AUDIO_IN+LANDMARK_IN, 8H) fused/reordered input weights
    whh_ref,          # (2H, 8H) block-diagonal recurrent weights
    b_ref,            # (1, 8H)  combined biases
    wqkv_ref, bqkv_ref,   # (H, 3H), (1, 3H)
    wo_ref, bo_ref,       # (H, H), (1, H)
    wc_ref, bc_ref,       # (H, C), (1, C)
    out_ref,              # (B_pad, C)
    pre_ref,              # scratch (T_max*B_pad, 8H)
    *, seq_a, seq_l, batch_pad):

    t_max = max(seq_a, seq_l)

    # ---- 1. hoisted input projection: one fat MXU matmul for all steps ----
    pre_ref[...] = jnp.dot(x_ref[...], wih_ref[...],
                           preferred_element_type=jnp.float32)

    whh = whh_ref[...]
    bias = b_ref[...]

    # lane selector: 1.0 for the audio half of the concatenated state
    lane = lax.broadcasted_iota(jnp.int32, (1, H2), 1)
    sel_a = (lane < HIDDEN).astype(jnp.float32)

    # ---- 2. fused recurrence over both LSTMs (single loop, 128-contraction) ----
    def step(t, carry):
        h, c, hsum = carry                                         # (B_pad, 2H)
        row = pl.multiple_of(t * batch_pad, batch_pad)
        pre = pre_ref[pl.ds(row, batch_pad), :]                     # (B_pad, 8H)
        gates = pre + jnp.dot(h, whh,
                              preferred_element_type=jnp.float32) + bias
        sg = jax.nn.sigmoid(gates[:, :3 * H2])                      # (B_pad, 384)
        g = jnp.tanh(gates[:, 3 * H2:])                             # (B_pad, 128)
        i = sg[:, 0:H2]
        f = sg[:, H2:2 * H2]
        o = sg[:, 2 * H2:3 * H2]
        c_new = f * c + i * g
        h_new = o * jnp.tanh(c_new)
        if seq_a == seq_l:
            return h_new, c_new, hsum + h_new
        # unequal sequence lengths: freeze the finished modality's state
        m = (jnp.where(t < seq_a, sel_a, 0.0)
             + jnp.where(t < seq_l, 1.0 - sel_a, 0.0))
        h_keep = m * h_new + (1.0 - m) * h
        c_keep = m * c_new + (1.0 - m) * c
        return h_keep, c_keep, hsum + m * h_new

    z = jnp.zeros((batch_pad, H2), jnp.float32)
    unroll = True if t_max <= 32 else 4
    _, _, hsum = lax.fori_loop(0, t_max, step, (z, z, z), unroll=unroll)

    # temporal mean per modality (audio half / landmark half of the lanes)
    inv_len = sel_a * (1.0 / float(seq_a)) + (1.0 - sel_a) * (1.0 / float(seq_l))
    reps = hsum * inv_len                                           # (B_pad, 2H)

    # ---- 3. 'self' fusion: MultiheadAttention over the 2 stacked tokens ----
    # rows 0:B_pad = audio token, rows B_pad:2B_pad = landmark token
    tokens = jnp.concatenate([reps[:, :HIDDEN], reps[:, HIDDEN:]], axis=0)
    qkv = jnp.dot(tokens, wqkv_ref[...],
                  preferred_element_type=jnp.float32) + bqkv_ref[...]
    q = qkv[:, 0:HIDDEN]
    k = qkv[:, HIDDEN:2 * HIDDEN]
    v = qkv[:, 2 * HIDDEN:3 * HIDDEN]

    # keys / values of each token, tiled so each query row sees its own batch
    ka = jnp.concatenate([k[:batch_pad], k[:batch_pad]], axis=0)
    kl = jnp.concatenate([k[batch_pad:], k[batch_pad:]], axis=0)
    va = jnp.concatenate([v[:batch_pad], v[:batch_pad]], axis=0)
    vl = jnp.concatenate([v[batch_pad:], v[batch_pad:]], axis=0)

    scale = 1.0 / math.sqrt(HEAD_DIM)
    heads = []
    for h_idx in range(NUM_HEADS):
        sl = slice(h_idx * HEAD_DIM, (h_idx + 1) * HEAD_DIM)
        s0 = jnp.sum(q[:, sl] * ka[:, sl], axis=-1, keepdims=True) * scale
        s1 = jnp.sum(q[:, sl] * kl[:, sl], axis=-1, keepdims=True) * scale
        mx = jnp.maximum(s0, s1)
        e0 = jnp.exp(s0 - mx)
        e1 = jnp.exp(s1 - mx)
        inv_d = 1.0 / (e0 + e1)
        heads.append((e0 * va[:, sl] + e1 * vl[:, sl]) * inv_d)
    ctx = jnp.concatenate(heads, axis=-1)                           # (2B_pad, H)

    attn_out = jnp.dot(ctx, wo_ref[...],
                       preferred_element_type=jnp.float32) + bo_ref[...]
    fused = 0.5 * (attn_out[:batch_pad] + attn_out[batch_pad:])     # mean over 2 tokens
    # dropouts are identity at inference
    out_ref[...] = jnp.dot(fused, wc_ref[...],
                           preferred_element_type=jnp.float32) + bc_ref[...]


def _split_ifgo(w):
    """Split a PyTorch-ordered (4H, ...) gate tensor into (i, f, g, o) chunks."""
    return (w[0 * HIDDEN:1 * HIDDEN], w[1 * HIDDEN:2 * HIDDEN],
            w[2 * HIDDEN:3 * HIDDEN], w[3 * HIDDEN:4 * HIDDEN])


def multimodal_lstm_forward(audio, landmarks, params):
    """audio: (B, Ta, 23) f32; landmarks: (B, Tl, 3, 20) f32 -> logits (B, 2)."""
    batch, seq_a, _ = audio.shape
    seq_l = landmarks.shape[1]
    t_max = max(seq_a, seq_l)
    b_pad = -(-batch // 8) * 8            # round batch up to one sublane tile

    # ---- inputs: time-major, zero-padded, feature-concatenated, flattened ----
    def prep(x, t_len):
        x = jnp.transpose(x.astype(jnp.float32), (1, 0, 2))        # (T, B, F)
        return jnp.pad(x, ((0, t_max - t_len), (0, b_pad - batch), (0, 0)))

    land_flat = landmarks.reshape(batch, seq_l, LANDMARK_IN)
    x_cat = jnp.concatenate([prep(audio, seq_a), prep(land_flat, seq_l)],
                            axis=-1)                                # (T,Bp,83)
    x_cat = x_cat.reshape(t_max * b_pad, AUDIO_IN + LANDMARK_IN)

    p = params

    # ---- fused / gate-reordered LSTM weights ----
    # gate column layout (width 8H): [i_a,i_l | f_a,f_l | o_a,o_l | g_a,g_l]
    ia, fa, ga, oa = _split_ifgo(p['wih_a'])                        # (H, 23)
    il, fl, gl, ol = _split_ifgo(p['wih_l'])                        # (H, 60)
    z_below = jnp.zeros((LANDMARK_IN, HIDDEN), jnp.float32)
    z_above = jnp.zeros((AUDIO_IN, HIDDEN), jnp.float32)

    def a_icol(g):
        return jnp.concatenate([g.T, z_below], axis=0)              # (83, H)

    def l_icol(g):
        return jnp.concatenate([z_above, g.T], axis=0)              # (83, H)

    wih_cat = jnp.concatenate(
        [a_icol(ia), l_icol(il), a_icol(fa), l_icol(fl),
         a_icol(oa), l_icol(ol), a_icol(ga), l_icol(gl)], axis=1)   # (83, 8H)

    hia, hfa, hga, hoa = _split_ifgo(p['whh_a'])                    # (H, H)
    hil, hfl, hgl, hol = _split_ifgo(p['whh_l'])
    z_h = jnp.zeros((HIDDEN, HIDDEN), jnp.float32)

    def a_hcol(g):
        return jnp.concatenate([g.T, z_h], axis=0)                  # (2H, H)

    def l_hcol(g):
        return jnp.concatenate([z_h, g.T], axis=0)                  # (2H, H)

    whh_cat = jnp.concatenate(
        [a_hcol(hia), l_hcol(hil), a_hcol(hfa), l_hcol(hfl),
         a_hcol(hoa), l_hcol(hol), a_hcol(hga), l_hcol(hgl)], axis=1)  # (2H, 8H)

    bia, bfa, bga, boa = _split_ifgo(p['bih_a'] + p['bhh_a'])
    bil, bfl, bgl, bol = _split_ifgo(p['bih_l'] + p['bhh_l'])
    b_cat = jnp.concatenate(
        [bia, bil, bfa, bfl, boa, bol, bga, bgl]).reshape(1, G8)

    # ---- attention / classifier weights ----
    w_qkv = p['attn_in_w'].T                                        # (H, 3H)
    b_qkv = p['attn_in_b'].reshape(1, 3 * HIDDEN)
    wo = p['attn_out_w'].T
    bo = p['attn_out_b'].reshape(1, HIDDEN)
    wc = p['cls_w'].T
    bc = p['cls_b'].reshape(1, NUM_CLASSES)

    args = (x_cat, wih_cat, whh_cat, b_cat,
            w_qkv, b_qkv, wo, bo, wc, bc)

    kernel = functools.partial(_mm_lstm_kernel, seq_a=seq_a, seq_l=seq_l,
                               batch_pad=b_pad)
    in_specs = [pl.BlockSpec(memory_space=pltpu.MemorySpace.VMEM)
                for _ in args]
    out = pl.pallas_call(
        kernel,
        out_shape=jax.ShapeDtypeStruct((b_pad, NUM_CLASSES), jnp.float32),
        in_specs=in_specs,
        out_specs=pl.BlockSpec(memory_space=pltpu.MemorySpace.VMEM),
        scratch_shapes=[pltpu.VMEM((t_max * b_pad, G8), jnp.float32)],
    )(*args)
    return out[:batch]


def init_params(key):
    """Deterministic synthetic parameters (same shapes as the torch module)."""
    ks = jax.random.split(key, 14)
    s = 0.1

    def nrm(k, shape):
        return jax.random.normal(k, shape, jnp.float32) * s

    return {
        'wih_a': nrm(ks[0], (4 * HIDDEN, AUDIO_IN)),
        'whh_a': nrm(ks[1], (4 * HIDDEN, HIDDEN)),
        'bih_a': nrm(ks[2], (4 * HIDDEN,)),
        'bhh_a': nrm(ks[3], (4 * HIDDEN,)),
        'wih_l': nrm(ks[4], (4 * HIDDEN, LANDMARK_IN)),
        'whh_l': nrm(ks[5], (4 * HIDDEN, HIDDEN)),
        'bih_l': nrm(ks[6], (4 * HIDDEN,)),
        'bhh_l': nrm(ks[7], (4 * HIDDEN,)),
        'attn_in_w': nrm(ks[8], (3 * HIDDEN, HIDDEN)),
        'attn_in_b': nrm(ks[9], (3 * HIDDEN,)),
        'attn_out_w': nrm(ks[10], (HIDDEN, HIDDEN)),
        'attn_out_b': nrm(ks[11], (HIDDEN,)),
        'cls_w': nrm(ks[12], (NUM_CLASSES, HIDDEN)),
        'cls_b': nrm(ks[13], (NUM_CLASSES,)),
    }


def reference_forward(audio, landmarks, p):
    """Pure-JAX reference mirroring the PyTorch forward (eval mode)."""
    batch = audio.shape[0]

    def lstm_mean(x, wih, whh, bih, bhh):
        def step(carry, x_t):
            h, c = carry
            gates = x_t @ wih.T + bih + h @ whh.T + bhh
            i, f, g, o = jnp.split(gates, 4, axis=-1)
            i = jax.nn.sigmoid(i)
            f = jax.nn.sigmoid(f)
            g = jnp.tanh(g)
            o = jax.nn.sigmoid(o)
            c = f * c + i * g
            h = o * jnp.tanh(c)
            return (h, c), h
        z = jnp.zeros((batch, HIDDEN), jnp.float32)
        _, hs = lax.scan(step, (z, z), jnp.transpose(x, (1, 0, 2)))
        return jnp.mean(hs, axis=0)

    audio_rep = lstm_mean(audio, p['wih_a'], p['whh_a'], p['bih_a'], p['bhh_a'])
    land = landmarks.reshape(batch, landmarks.shape[1], -1)
    land_rep = lstm_mean(land, p['wih_l'], p['whh_l'], p['bih_l'], p['bhh_l'])

    tokens = jnp.stack([audio_rep, land_rep], axis=0)           # (L, B, H)
    qkv = tokens @ p['attn_in_w'].T + p['attn_in_b']            # (L, B, 3H)
    q, k, v = jnp.split(qkv, 3, axis=-1)

    def split_heads(x):
        return x.reshape(2, batch, NUM_HEADS, HEAD_DIM)

    qh, kh, vh = split_heads(q), split_heads(k), split_heads(v)
    scores = jnp.einsum('lbhd,mbhd->bhlm', qh, kh) / math.sqrt(HEAD_DIM)
    attnw = jax.nn.softmax(scores, axis=-1)
    ctx = jnp.einsum('bhlm,mbhd->lbhd', attnw, vh).reshape(2, batch, HIDDEN)
    attn_out = ctx @ p['attn_out_w'].T + p['attn_out_b']
    fused = jnp.mean(attn_out, axis=0)
    return fused @ p['cls_w'].T + p['cls_b']


if __name__ == "__main__":
    key = jax.random.PRNGKey(0)
    k_params, k_a, k_l = jax.random.split(key, 3)
    params = init_params(k_params)

    batch, seq_a, seq_l = 2, 8, 8
    audio = jax.random.normal(k_a, (batch, seq_a, AUDIO_IN), jnp.float32)
    landmarks = jax.random.normal(k_l, (batch, seq_l, 3, 20), jnp.float32)

    logits = multimodal_lstm_forward(audio, landmarks, params)
    logits = jax.block_until_ready(logits)

    ref = reference_forward(audio, landmarks, params)
    assert logits.shape == (batch, NUM_CLASSES)
    assert jnp.allclose(logits, ref, atol=1e-3, rtol=1e-2), (logits, ref)
    print("KERNEL_OK")
</pallas_src>

<mosaic_0001>
module attributes {stable_mosaic.version = 11 : i64} {
  func.func @_mm_lstm_kernel(%arg0: memref<64x83xf32, #tpu.memory_space<vmem>>, %arg1: memref<83x512xf32, #tpu.memory_space<vmem>>, %arg2: memref<128x512xf32, #tpu.memory_space<vmem>>, %arg3: memref<1x512xf32, #tpu.memory_space<vmem>>, %arg4: memref<64x192xf32, #tpu.memory_space<vmem>>, %arg5: memref<1x192xf32, #tpu.memory_space<vmem>>, %arg6: memref<64x64xf32, #tpu.memory_space<vmem>>, %arg7: memref<1x64xf32, #tpu.memory_space<vmem>>, %arg8: memref<64x2xf32, #tpu.memory_space<vmem>>, %arg9: memref<1x2xf32, #tpu.memory_space<vmem>>, %arg10: memref<8x2xf32, #tpu.memory_space<vmem>>, %arg11: memref<64x512xf32, #tpu.memory_space<vmem>>) attributes {dimension_semantics = [], scalar_prefetch = 0 : i64, scratch_operands = 1 : i64, tpu.core_type = #tpu.core_type<tc>} {
    %c0 = arith.constant 0 : index
    %c0_0 = arith.constant 0 : index
    %0 = vector.load %arg0[%c0, %c0_0] : memref<64x83xf32, #tpu.memory_space<vmem>>, vector<64x83xf32>
    %c0_1 = arith.constant 0 : index
    %c0_2 = arith.constant 0 : index
    %1 = vector.load %arg1[%c0_1, %c0_2] : memref<83x512xf32, #tpu.memory_space<vmem>>, vector<83x512xf32>
    %cst = arith.constant dense<0.000000e+00> : vector<64x512xf32>
    %2 = tpu.matmul %0, %1, %cst {dimension_numbers = #tpu.dot_dimension_numbers<[1], [0], [0], [1], [0, 0, 1, 1], [], []>} : vector<64x83xf32>, vector<83x512xf32>, vector<64x512xf32> -> vector<64x512xf32>
    %c0_3 = arith.constant 0 : index
    %c0_4 = arith.constant 0 : index
    %3 = vector.load %arg11[%c0_3, %c0_4] : memref<64x512xf32, #tpu.memory_space<vmem>>, vector<64x512xf32>
    tpu.vector_store %arg11[%c0_3, %c0_4], %2 {strides = array<i32>} : memref<64x512xf32, #tpu.memory_space<vmem>>, vector<64x512xf32>,
    %c0_5 = arith.constant 0 : index
    %c0_6 = arith.constant 0 : index
    %4 = vector.load %arg2[%c0_5, %c0_6] : memref<128x512xf32, #tpu.memory_space<vmem>>, vector<128x512xf32>
    %c0_7 = arith.constant 0 : index
    %c0_8 = arith.constant 0 : index
    %5 = vector.load %arg3[%c0_7, %c0_8] : memref<1x512xf32, #tpu.memory_space<vmem>>, vector<1x512xf32>
    %6 = tpu.iota {dimensions = array<i32: 1>} : vector<1x128xi32>
    %c64_i32 = arith.constant 64 : i32
    %7 = vector.broadcast %c64_i32 : i32 to vector<1x128xi32>
    %8 = arith.cmpi slt, %6, %7 : vector<1x128xi32>
    %9 = arith.extui %8 : vector<1x128xi1> to vector<1x128xi32>
    %10 = arith.sitofp %9 : vector<1x128xi32> to vector<1x128xf32>
    %cst_9 = arith.constant 0.000000e+00 : f32
    %11 = vector.broadcast %cst_9 : f32 to vector<8x128xf32>
    %c0_i32 = arith.constant 0 : i32
    %c8_i32 = arith.constant 8 : i32
    %12 = arith.muli %c0_i32, %c8_i32 : i32
    %13 = tpu.assume_multiple %12, 8 : i32
    %14 = arith.index_cast %13 : i32 to index
    %c0_10 = arith.constant 0 : index
    %15 = vector.load %arg11[%14, %c0_10] : memref<64x512xf32, #tpu.memory_space<vmem>>, vector<8x512xf32>
    %cst_11 = arith.constant dense<0.000000e+00> : vector<8x512xf32>
    %16 = tpu.matmul %11, %4, %cst_11 {dimension_numbers = #tpu.dot_dimension_numbers<[1], [0], [0], [1], [0, 0, 1, 1], [], []>} : vector<8x128xf32>, vector<128x512xf32>, vector<8x512xf32> -> vector<8x512xf32>
    %17 = arith.addf %15, %16 : vector<8x512xf32>
    %18 = vector.broadcast %5 : vector<1x512xf32> to vector<8x512xf32>
    %19 = arith.addf %17, %18 : vector<8x512xf32>
    %20 = vector.extract_strided_slice %19 {offsets = [0, 0], sizes = [8, 384], strides = [1, 1]} : vector<8x512xf32> to vector<8x384xf32>
    %21 = arith.negf %20 : vector<8x384xf32>
    %22 = math.exp %21 : vector<8x384xf32>
    %cst_12 = arith.constant 1.000000e+00 : f32
    %23 = vector.broadcast %cst_12 : f32 to vector<8x384xf32>
    %24 = arith.addf %23, %22 : vector<8x384xf32>
    %25 = arith.divf %23, %24 : vector<8x384xf32>
    %26 = vector.extract_strided_slice %19 {offsets = [0, 384], sizes = [8, 128], strides = [1, 1]} : vector<8x512xf32> to vector<8x128xf32>
    %27 = math.tanh %26 : vector<8x128xf32>
    %28 = vector.extract_strided_slice %25 {offsets = [0, 0], sizes = [8, 128], strides = [1, 1]} : vector<8x384xf32> to vector<8x128xf32>
    %29 = vector.extract_strided_slice %25 {offsets = [0, 128], sizes = [8, 128], strides = [1, 1]} : vector<8x384xf32> to vector<8x128xf32>
    %30 = vector.extract_strided_slice %25 {offsets = [0, 256], sizes = [8, 128], strides = [1, 1]} : vector<8x384xf32> to vector<8x128xf32>
    %31 = arith.mulf %29, %11 : vector<8x128xf32>
    %32 = arith.mulf %28, %27 : vector<8x128xf32>
    %33 = arith.addf %31, %32 : vector<8x128xf32>
    %34 = math.tanh %33 : vector<8x128xf32>
    %35 = arith.mulf %30, %34 : vector<8x128xf32>
    %36 = arith.addf %11, %35 : vector<8x128xf32>
    %c1_i32 = arith.constant 1 : i32
    %c8_i32_13 = arith.constant 8 : i32
    %37 = arith.muli %c1_i32, %c8_i32_13 : i32
    %38 = tpu.assume_multiple %37, 8 : i32
    %39 = arith.index_cast %38 : i32 to index
    %c0_14 = arith.constant 0 : index
    %40 = vector.load %arg11[%39, %c0_14] : memref<64x512xf32, #tpu.memory_space<vmem>>, vector<8x512xf32>
    %cst_15 = arith.constant dense<0.000000e+00> : vector<8x512xf32>
    %41 = tpu.matmul %35, %4, %cst_15 {dimension_numbers = #tpu.dot_dimension_numbers<[1], [0], [0], [1], [0, 0, 1, 1], [], []>} : vector<8x128xf32>, vector<128x512xf32>, vector<8x512xf32> -> vector<8x512xf32>
    %42 = arith.addf %40, %41 : vector<8x512xf32>
    %43 = vector.broadcast %5 : vector<1x512xf32> to vector<8x512xf32>
    %44 = arith.addf %42, %43 : vector<8x512xf32>
    %45 = vector.extract_strided_slice %44 {offsets = [0, 0], sizes = [8, 384], strides = [1, 1]} : vector<8x512xf32> to vector<8x384xf32>
    %46 = arith.negf %45 : vector<8x384xf32>
    %47 = math.exp %46 : vector<8x384xf32>
    %cst_16 = arith.constant 1.000000e+00 : f32
    %48 = vector.broadcast %cst_16 : f32 to vector<8x384xf32>
    %49 = arith.addf %48, %47 : vector<8x384xf32>
    %50 = arith.divf %48, %49 : vector<8x384xf32>
    %51 = vector.extract_strided_slice %44 {offsets = [0, 384], sizes = [8, 128], strides = [1, 1]} : vector<8x512xf32> to vector<8x128xf32>
    %52 = math.tanh %51 : vector<8x128xf32>
    %53 = vector.extract_strided_slice %50 {offsets = [0, 0], sizes = [8, 128], strides = [1, 1]} : vector<8x384xf32> to vector<8x128xf32>
    %54 = vector.extract_strided_slice %50 {offsets = [0, 128], sizes = [8, 128], strides = [1, 1]} : vector<8x384xf32> to vector<8x128xf32>
    %55 = vector.extract_strided_slice %50 {offsets = [0, 256], sizes = [8, 128], strides = [1, 1]} : vector<8x384xf32> to vector<8x128xf32>
    %56 = arith.mulf %54, %33 : vector<8x128xf32>
    %57 = arith.mulf %53, %52 : vector<8x128xf32>
    %58 = arith.addf %56, %57 : vector<8x128xf32>
    %59 = math.tanh %58 : vector<8x128xf32>
    %60 = arith.mulf %55, %59 : vector<8x128xf32>
    %61 = arith.addf %36, %60 : vector<8x128xf32>
    %c2_i32 = arith.constant 2 : i32
    %c8_i32_17 = arith.constant 8 : i32
    %62 = arith.muli %c2_i32, %c8_i32_17 : i32
    %63 = tpu.assume_multiple %62, 8 : i32
    %64 = arith.index_cast %63 : i32 to index
    %c0_18 = arith.constant 0 : index
    %65 = vector.load %arg11[%64, %c0_18] : memref<64x512xf32, #tpu.memory_space<vmem>>, vector<8x512xf32>
    %cst_19 = arith.constant dense<0.000000e+00> : vector<8x512xf32>
    %66 = tpu.matmul %60, %4, %cst_19 {dimension_numbers = #tpu.dot_dimension_numbers<[1], [0], [0], [1], [0, 0, 1, 1], [], []>} : vector<8x128xf32>, vector<128x512xf32>, vector<8x512xf32> -> vector<8x512xf32>
    %67 = arith.addf %65, %66 : vector<8x512xf32>
    %68 = vector.broadcast %5 : vector<1x512xf32> to vector<8x512xf32>
    %69 = arith.addf %67, %68 : vector<8x512xf32>
    %70 = vector.extract_strided_slice %69 {offsets = [0, 0], sizes = [8, 384], strides = [1, 1]} : vector<8x512xf32> to vector<8x384xf32>
    %71 = arith.negf %70 : vector<8x384xf32>
    %72 = math.exp %71 : vector<8x384xf32>
    %cst_20 = arith.constant 1.000000e+00 : f32
    %73 = vector.broadcast %cst_20 : f32 to vector<8x384xf32>
    %74 = arith.addf %73, %72 : vector<8x384xf32>
    %75 = arith.divf %73, %74 : vector<8x384xf32>
    %76 = vector.extract_strided_slice %69 {offsets = [0, 384], sizes = [8, 128], strides = [1, 1]} : vector<8x512xf32> to vector<8x128xf32>
    %77 = math.tanh %76 : vector<8x128xf32>
    %78 = vector.extract_strided_slice %75 {offsets = [0, 0], sizes = [8, 128], strides = [1, 1]} : vector<8x384xf32> to vector<8x128xf32>
    %79 = vector.extract_strided_slice %75 {offsets = [0, 128], sizes = [8, 128], strides = [1, 1]} : vector<8x384xf32> to vector<8x128xf32>
    %80 = vector.extract_strided_slice %75 {offsets = [0, 256], sizes = [8, 128], strides = [1, 1]} : vector<8x384xf32> to vector<8x128xf32>
    %81 = arith.mulf %79, %58 : vector<8x128xf32>
    %82 = arith.mulf %78, %77 : vector<8x128xf32>
    %83 = arith.addf %81, %82 : vector<8x128xf32>
    %84 = math.tanh %83 : vector<8x128xf32>
    %85 = arith.mulf %80, %84 : vector<8x128xf32>
    %86 = arith.addf %61, %85 : vector<8x128xf32>
    %c3_i32 = arith.constant 3 : i32
    %c8_i32_21 = arith.constant 8 : i32
    %87 = arith.muli %c3_i32, %c8_i32_21 : i32
    %88 = tpu.assume_multiple %87, 8 : i32
    %89 = arith.index_cast %88 : i32 to index
    %c0_22 = arith.constant 0 : index
    %90 = vector.load %arg11[%89, %c0_22] : memref<64x512xf32, #tpu.memory_space<vmem>>, vector<8x512xf32>
    %cst_23 = arith.constant dense<0.000000e+00> : vector<8x512xf32>
    %91 = tpu.matmul %85, %4, %cst_23 {dimension_numbers = #tpu.dot_dimension_numbers<[1], [0], [0], [1], [0, 0, 1, 1], [], []>} : vector<8x128xf32>, vector<128x512xf32>, vector<8x512xf32> -> vector<8x512xf32>
    %92 = arith.addf %90, %91 : vector<8x512xf32>
    %93 = vector.broadcast %5 : vector<1x512xf32> to vector<8x512xf32>
    %94 = arith.addf %92, %93 : vector<8x512xf32>
    %95 = vector.extract_strided_slice %94 {offsets = [0, 0], sizes = [8, 384], strides = [1, 1]} : vector<8x512xf32> to vector<8x384xf32>
    %96 = arith.negf %95 : vector<8x384xf32>
    %97 = math.exp %96 : vector<8x384xf32>
    %cst_24 = arith.constant 1.000000e+00 : f32
    %98 = vector.broadcast %cst_24 : f32 to vector<8x384xf32>
    %99 = arith.addf %98, %97 : vector<8x384xf32>
    %100 = arith.divf %98, %99 : vector<8x384xf32>
    %101 = vector.extract_strided_slice %94 {offsets = [0, 384], sizes = [8, 128], strides = [1, 1]} : vector<8x512xf32> to vector<8x128xf32>
    %102 = math.tanh %101 : vector<8x128xf32>
    %103 = vector.extract_strided_slice %100 {offsets = [0, 0], sizes = [8, 128], strides = [1, 1]} : vector<8x384xf32> to vector<8x128xf32>
    %104 = vector.extract_strided_slice %100 {offsets = [0, 128], sizes = [8, 128], strides = [1, 1]} : vector<8x384xf32> to vector<8x128xf32>
    %105 = vector.extract_strided_slice %100 {offsets = [0, 256], sizes = [8, 128], strides = [1, 1]} : vector<8x384xf32> to vector<8x128xf32>
    %106 = arith.mulf %104, %83 : vector<8x128xf32>
    %107 = arith.mulf %103, %102 : vector<8x128xf32>
    %108 = arith.addf %106, %107 : vector<8x128xf32>
    %109 = math.tanh %108 : vector<8x128xf32>
    %110 = arith.mulf %105, %109 : vector<8x128xf32>
    %111 = arith.addf %86, %110 : vector<8x128xf32>
    %c4_i32 = arith.constant 4 : i32
    %c8_i32_25 = arith.constant 8 : i32
    %112 = arith.muli %c4_i32, %c8_i32_25 : i32
    %113 = tpu.assume_multiple %112, 8 : i32
    %114 = arith.index_cast %113 : i32 to index
    %c0_26 = arith.constant 0 : index
    %115 = vector.load %arg11[%114, %c0_26] : memref<64x512xf32, #tpu.memory_space<vmem>>, vector<8x512xf32>
    %cst_27 = arith.constant dense<0.000000e+00> : vector<8x512xf32>
    %116 = tpu.matmul %110, %4, %cst_27 {dimension_numbers = #tpu.dot_dimension_numbers<[1], [0], [0], [1], [0, 0, 1, 1], [], []>} : vector<8x128xf32>, vector<128x512xf32>, vector<8x512xf32> -> vector<8x512xf32>
    %117 = arith.addf %115, %116 : vector<8x512xf32>
    %118 = vector.broadcast %5 : vector<1x512xf32> to vector<8x512xf32>
    %119 = arith.addf %117, %118 : vector<8x512xf32>
    %120 = vector.extract_strided_slice %119 {offsets = [0, 0], sizes = [8, 384], strides = [1, 1]} : vector<8x512xf32> to vector<8x384xf32>
    %121 = arith.negf %120 : vector<8x384xf32>
    %122 = math.exp %121 : vector<8x384xf32>
    %cst_28 = arith.constant 1.000000e+00 : f32
    %123 = vector.broadcast %cst_28 : f32 to vector<8x384xf32>
    %124 = arith.addf %123, %122 : vector<8x384xf32>
    %125 = arith.divf %123, %124 : vector<8x384xf32>
    %126 = vector.extract_strided_slice %119 {offsets = [0, 384], sizes = [8, 128], strides = [1, 1]} : vector<8x512xf32> to vector<8x128xf32>
    %127 = math.tanh %126 : vector<8x128xf32>
    %128 = vector.extract_strided_slice %125 {offsets = [0, 0], sizes = [8, 128], strides = [1, 1]} : vector<8x384xf32> to vector<8x128xf32>
    %129 = vector.extract_strided_slice %125 {offsets = [0, 128], sizes = [8, 128], strides = [1, 1]} : vector<8x384xf32> to vector<8x128xf32>
    %130 = vector.extract_strided_slice %125 {offsets = [0, 256], sizes = [8, 128], strides = [1, 1]} : vector<8x384xf32> to vector<8x128xf32>
    %131 = arith.mulf %129, %108 : vector<8x128xf32>
    %132 = arith.mulf %128, %127 : vector<8x128xf32>
    %133 = arith.addf %131, %132 : vector<8x128xf32>
    %134 = math.tanh %133 : vector<8x128xf32>
    %135 = arith.mulf %130, %134 : vector<8x128xf32>
    %136 = arith.addf %111, %135 : vector<8x128xf32>
    %c5_i32 = arith.constant 5 : i32
    %c8_i32_29 = arith.constant 8 : i32
    %137 = arith.muli %c5_i32, %c8_i32_29 : i32
    %138 = tpu.assume_multiple %137, 8 : i32
    %139 = arith.index_cast %138 : i32 to index
    %c0_30 = arith.constant 0 : index
    %140 = vector.load %arg11[%139, %c0_30] : memref<64x512xf32, #tpu.memory_space<vmem>>, vector<8x512xf32>
    %cst_31 = arith.constant dense<0.000000e+00> : vector<8x512xf32>
    %141 = tpu.matmul %135, %4, %cst_31 {dimension_numbers = #tpu.dot_dimension_numbers<[1], [0], [0], [1], [0, 0, 1, 1], [], []>} : vector<8x128xf32>, vector<128x512xf32>, vector<8x512xf32> -> vector<8x512xf32>
    %142 = arith.addf %140, %141 : vector<8x512xf32>
    %143 = vector.broadcast %5 : vector<1x512xf32> to vector<8x512xf32>
    %144 = arith.addf %142, %143 : vector<8x512xf32>
    %145 = vector.extract_strided_slice %144 {offsets = [0, 0], sizes = [8, 384], strides = [1, 1]} : vector<8x512xf32> to vector<8x384xf32>
    %146 = arith.negf %145 : vector<8x384xf32>
    %147 = math.exp %146 : vector<8x384xf32>
    %cst_32 = arith.constant 1.000000e+00 : f32
    %148 = vector.broadcast %cst_32 : f32 to vector<8x384xf32>
    %149 = arith.addf %148, %147 : vector<8x384xf32>
    %150 = arith.divf %148, %149 : vector<8x384xf32>
    %151 = vector.extract_strided_slice %144 {offsets = [0, 384], sizes = [8, 128], strides = [1, 1]} : vector<8x512xf32> to vector<8x128xf32>
    %152 = math.tanh %151 : vector<8x128xf32>
    %153 = vector.extract_strided_slice %150 {offsets = [0, 0], sizes = [8, 128], strides = [1, 1]} : vector<8x384xf32> to vector<8x128xf32>
    %154 = vector.extract_strided_slice %150 {offsets = [0, 128], sizes = [8, 128], strides = [1, 1]} : vector<8x384xf32> to vector<8x128xf32>
    %155 = vector.extract_strided_slice %150 {offsets = [0, 256], sizes = [8, 128], strides = [1, 1]} : vector<8x384xf32> to vector<8x128xf32>
    %156 = arith.mulf %154, %133 : vector<8x128xf32>
    %157 = arith.mulf %153, %152 : vector<8x128xf32>
    %158 = arith.addf %156, %157 : vector<8x128xf32>
    %159 = math.tanh %158 : vector<8x128xf32>
    %160 = arith.mulf %155, %159 : vector<8x128xf32>
    %161 = arith.addf %136, %160 : vector<8x128xf32>
    %c6_i32 = arith.constant 6 : i32
    %c8_i32_33 = arith.constant 8 : i32
    %162 = arith.muli %c6_i32, %c8_i32_33 : i32
    %163 = tpu.assume_multiple %162, 8 : i32
    %164 = arith.index_cast %163 : i32 to index
    %c0_34 = arith.constant 0 : index
    %165 = vector.load %arg11[%164, %c0_34] : memref<64x512xf32, #tpu.memory_space<vmem>>, vector<8x512xf32>
    %cst_35 = arith.constant dense<0.000000e+00> : vector<8x512xf32>
    %166 = tpu.matmul %160, %4, %cst_35 {dimension_numbers = #tpu.dot_dimension_numbers<[1], [0], [0], [1], [0, 0, 1, 1], [], []>} : vector<8x128xf32>, vector<128x512xf32>, vector<8x512xf32> -> vector<8x512xf32>
    %167 = arith.addf %165, %166 : vector<8x512xf32>
    %168 = vector.broadcast %5 : vector<1x512xf32> to vector<8x512xf32>
    %169 = arith.addf %167, %168 : vector<8x512xf32>
    %170 = vector.extract_strided_slice %169 {offsets = [0, 0], sizes = [8, 384], strides = [1, 1]} : vector<8x512xf32> to vector<8x384xf32>
    %171 = arith.negf %170 : vector<8x384xf32>
    %172 = math.exp %171 : vector<8x384xf32>
    %cst_36 = arith.constant 1.000000e+00 : f32
    %173 = vector.broadcast %cst_36 : f32 to vector<8x384xf32>
    %174 = arith.addf %173, %172 : vector<8x384xf32>
    %175 = arith.divf %173, %174 : vector<8x384xf32>
    %176 = vector.extract_strided_slice %169 {offsets = [0, 384], sizes = [8, 128], strides = [1, 1]} : vector<8x512xf32> to vector<8x128xf32>
    %177 = math.tanh %176 : vector<8x128xf32>
    %178 = vector.extract_strided_slice %175 {offsets = [0, 0], sizes = [8, 128], strides = [1, 1]} : vector<8x384xf32> to vector<8x128xf32>
    %179 = vector.extract_strided_slice %175 {offsets = [0, 128], sizes = [8, 128], strides = [1, 1]} : vector<8x384xf32> to vector<8x128xf32>
    %180 = vector.extract_strided_slice %175 {offsets = [0, 256], sizes = [8, 128], strides = [1, 1]} : vector<8x384xf32> to vector<8x128xf32>
    %181 = arith.mulf %179, %158 : vector<8x128xf32>
    %182 = arith.mulf %178, %177 : vector<8x128xf32>
    %183 = arith.addf %181, %182 : vector<8x128xf32>
    %184 = math.tanh %183 : vector<8x128xf32>
    %185 = arith.mulf %180, %184 : vector<8x128xf32>
    %186 = arith.addf %161, %185 : vector<8x128xf32>
    %c7_i32 = arith.constant 7 : i32
    %c8_i32_37 = arith.constant 8 : i32
    %187 = arith.muli %c7_i32, %c8_i32_37 : i32
    %188 = tpu.assume_multiple %187, 8 : i32
    %189 = arith.index_cast %188 : i32 to index
    %c0_38 = arith.constant 0 : index
    %190 = vector.load %arg11[%189, %c0_38] : memref<64x512xf32, #tpu.memory_space<vmem>>, vector<8x512xf32>
    %cst_39 = arith.constant dense<0.000000e+00> : vector<8x512xf32>
    %191 = tpu.matmul %185, %4, %cst_39 {dimension_numbers = #tpu.dot_dimension_numbers<[1], [0], [0], [1], [0, 0, 1, 1], [], []>} : vector<8x128xf32>, vector<128x512xf32>, vector<8x512xf32> -> vector<8x512xf32>
    %192 = arith.addf %190, %191 : vector<8x512xf32>
    %193 = vector.broadcast %5 : vector<1x512xf32> to vector<8x512xf32>
    %194 = arith.addf %192, %193 : vector<8x512xf32>
    %195 = vector.extract_strided_slice %194 {offsets = [0, 0], sizes = [8, 384], strides = [1, 1]} : vector<8x512xf32> to vector<8x384xf32>
    %196 = arith.negf %195 : vector<8x384xf32>
    %197 = math.exp %196 : vector<8x384xf32>
    %cst_40 = arith.constant 1.000000e+00 : f32
    %198 = vector.broadcast %cst_40 : f32 to vector<8x384xf32>
    %199 = arith.addf %198, %197 : vector<8x384xf32>
    %200 = arith.divf %198, %199 : vector<8x384xf32>
    %201 = vector.extract_strided_slice %194 {offsets = [0, 384], sizes = [8, 128], strides = [1, 1]} : vector<8x512xf32> to vector<8x128xf32>
    %202 = math.tanh %201 : vector<8x128xf32>
    %203 = vector.extract_strided_slice %200 {offsets = [0, 0], sizes = [8, 128], strides = [1, 1]} : vector<8x384xf32> to vector<8x128xf32>
    %204 = vector.extract_strided_slice %200 {offsets = [0, 128], sizes = [8, 128], strides = [1, 1]} : vector<8x384xf32> to vector<8x128xf32>
    %205 = vector.extract_strided_slice %200 {offsets = [0, 256], sizes = [8, 128], strides = [1, 1]} : vector<8x384xf32> to vector<8x128xf32>
    %206 = arith.mulf %204, %183 : vector<8x128xf32>
    %207 = arith.mulf %203, %202 : vector<8x128xf32>
    %208 = arith.addf %206, %207 : vector<8x128xf32>
    %209 = math.tanh %208 : vector<8x128xf32>
    %210 = arith.mulf %205, %209 : vector<8x128xf32>
    %211 = arith.addf %186, %210 : vector<8x128xf32>
    %c8_i32_41 = arith.constant 8 : i32
    %cst_42 = arith.constant 1.250000e-01 : f32
    %212 = vector.broadcast %cst_42 : f32 to vector<1x128xf32>
    %213 = arith.mulf %10, %212 : vector<1x128xf32>
    %cst_43 = arith.constant 1.000000e+00 : f32
    %214 = vector.broadcast %cst_43 : f32 to vector<1x128xf32>
    %215 = arith.subf %214, %10 : vector<1x128xf32>
    %cst_44 = arith.constant 1.250000e-01 : f32
    %216 = vector.broadcast %cst_44 : f32 to vector<1x128xf32>
    %217 = arith.mulf %215, %216 : vector<1x128xf32>
    %218 = arith.addf %213, %217 : vector<1x128xf32>
    %219 = vector.broadcast %218 : vector<1x128xf32> to vector<8x128xf32>
    %220 = arith.mulf %211, %219 : vector<8x128xf32>
    %221 = vector.extract_strided_slice %220 {offsets = [0, 0], sizes = [8, 64], strides = [1, 1]} : vector<8x128xf32> to vector<8x64xf32>
    %222 = vector.extract_strided_slice %220 {offsets = [0, 64], sizes = [8, 64], strides = [1, 1]} : vector<8x128xf32> to vector<8x64xf32>
    %223 = tpu.concatenate %221, %222 in 0 : vector<8x64xf32>, vector<8x64xf32> -> vector<16x64xf32>
    %c0_45 = arith.constant 0 : index
    %c0_46 = arith.constant 0 : index
    %224 = vector.load %arg4[%c0_45, %c0_46] : memref<64x192xf32, #tpu.memory_space<vmem>>, vector<64x192xf32>
    %cst_47 = arith.constant dense<0.000000e+00> : vector<16x192xf32>
    %225 = tpu.matmul %223, %224, %cst_47 {dimension_numbers = #tpu.dot_dimension_numbers<[1], [0], [0], [1], [0, 0, 1, 1], [], []>} : vector<16x64xf32>, vector<64x192xf32>, vector<16x192xf32> -> vector<16x192xf32>
    %c0_48 = arith.constant 0 : index
    %c0_49 = arith.constant 0 : index
    %226 = vector.load %arg5[%c0_48, %c0_49] : memref<1x192xf32, #tpu.memory_space<vmem>>, vector<1x192xf32>
    %227 = vector.broadcast %226 : vector<1x192xf32> to vector<16x192xf32>
    %228 = arith.addf %225, %227 : vector<16x192xf32>
    %229 = vector.extract_strided_slice %228 {offsets = [0, 0], sizes = [16, 64], strides = [1, 1]} : vector<16x192xf32> to vector<16x64xf32>
    %230 = vector.extract_strided_slice %228 {offsets = [0, 64], sizes = [16, 64], strides = [1, 1]} : vector<16x192xf32> to vector<16x64xf32>
    %231 = vector.extract_strided_slice %228 {offsets = [0, 128], sizes = [16, 64], strides = [1, 1]} : vector<16x192xf32> to vector<16x64xf32>
    %232 = vector.extract_strided_slice %230 {offsets = [0, 0], sizes = [8, 64], strides = [1, 1]} : vector<16x64xf32> to vector<8x64xf32>
    %233 = vector.extract_strided_slice %230 {offsets = [0, 0], sizes = [8, 64], strides = [1, 1]} : vector<16x64xf32> to vector<8x64xf32>
    %234 = tpu.concatenate %232, %233 in 0 : vector<8x64xf32>, vector<8x64xf32> -> vector<16x64xf32>
    %235 = vector.extract_strided_slice %230 {offsets = [8, 0], sizes = [8, 64], strides = [1, 1]} : vector<16x64xf32> to vector<8x64xf32>
    %236 = vector.extract_strided_slice %230 {offsets = [8, 0], sizes = [8, 64], strides = [1, 1]} : vector<16x64xf32> to vector<8x64xf32>
    %237 = tpu.concatenate %235, %236 in 0 : vector<8x64xf32>, vector<8x64xf32> -> vector<16x64xf32>
    %238 = vector.extract_strided_slice %231 {offsets = [0, 0], sizes = [8, 64], strides = [1, 1]} : vector<16x64xf32> to vector<8x64xf32>
    %239 = vector.extract_strided_slice %231 {offsets = [0, 0], sizes = [8, 64], strides = [1, 1]} : vector<16x64xf32> to vector<8x64xf32>
    %240 = tpu.concatenate %238, %239 in 0 : vector<8x64xf32>, vector<8x64xf32> -> vector<16x64xf32>
    %241 = vector.extract_strided_slice %231 {offsets = [8, 0], sizes = [8, 64], strides = [1, 1]} : vector<16x64xf32> to vector<8x64xf32>
    %242 = vector.extract_strided_slice %231 {offsets = [8, 0], sizes = [8, 64], strides = [1, 1]} : vector<16x64xf32> to vector<8x64xf32>
    %243 = tpu.concatenate %241, %242 in 0 : vector<8x64xf32>, vector<8x64xf32> -> vector<16x64xf32>
    %244 = vector.extract_strided_slice %229 {offsets = [0, 0], sizes = [16, 32], strides = [1, 1]} : vector<16x64xf32> to vector<16x32xf32>
    %245 = vector.extract_strided_slice %234 {offsets = [0, 0], sizes = [16, 32], strides = [1, 1]} : vector<16x64xf32> to vector<16x32xf32>
    %246 = arith.mulf %244, %245 : vector<16x32xf32>
    %cst_50 = arith.constant dense<0.000000e+00> : vector<16xf32>
    %247 = vector.multi_reduction <add>, %246, %cst_50 [1] : vector<16x32xf32> to vector<16xf32>
    %248 = vector.shape_cast %247 : vector<16xf32> to vector<16x1xf32>
    %cst_51 = arith.constant 0.176776692 : f32
    %249 = vector.broadcast %cst_51 : f32 to vector<16x1xf32>
    %250 = arith.mulf %248, %249 : vector<16x1xf32>
    %251 = vector.extract_strided_slice %229 {offsets = [0, 0], sizes = [16, 32], strides = [1, 1]} : vector<16x64xf32> to vector<16x32xf32>
    %252 = vector.extract_strided_slice %237 {offsets = [0, 0], sizes = [16, 32], strides = [1, 1]} : vector<16x64xf32> to vector<16x32xf32>
    %253 = arith.mulf %251, %252 : vector<16x32xf32>
    %cst_52 = arith.constant dense<0.000000e+00> : vector<16xf32>
    %254 = vector.multi_reduction <add>, %253, %cst_52 [1] : vector<16x32xf32> to vector<16xf32>
    %255 = vector.shape_cast %254 : vector<16xf32> to vector<16x1xf32>
    %cst_53 = arith.constant 0.176776692 : f32
    %256 = vector.broadcast %cst_53 : f32 to vector<16x1xf32>
    %257 = arith.mulf %255, %256 : vector<16x1xf32>
    %258 = arith.maximumf %250, %257 : vector<16x1xf32>
    %259 = arith.subf %250, %258 : vector<16x1xf32>
    %260 = math.exp %259 : vector<16x1xf32>
    %261 = arith.subf %257, %258 : vector<16x1xf32>
    %262 = math.exp %261 : vector<16x1xf32>
    %263 = arith.addf %260, %262 : vector<16x1xf32>
    %cst_54 = arith.constant 1.000000e+00 : f32
    %264 = vector.broadcast %cst_54 : f32 to vector<16x1xf32>
    %265 = arith.divf %264, %263 : vector<16x1xf32>
    %266 = vector.extract_strided_slice %240 {offsets = [0, 0], sizes = [16, 32], strides = [1, 1]} : vector<16x64xf32> to vector<16x32xf32>
    %267 = vector.broadcast %260 : vector<16x1xf32> to vector<16x32xf32>
    %268 = arith.mulf %267, %266 : vector<16x32xf32>
    %269 = vector.extract_strided_slice %243 {offsets = [0, 0], sizes = [16, 32], strides = [1, 1]} : vector<16x64xf32> to vector<16x32xf32>
    %270 = vector.broadcast %262 : vector<16x1xf32> to vector<16x32xf32>
    %271 = arith.mulf %270, %269 : vector<16x32xf32>
    %272 = arith.addf %268, %271 : vector<16x32xf32>
    %273 = vector.broadcast %265 : vector<16x1xf32> to vector<16x32xf32>
    %274 = arith.mulf %272, %273 : vector<16x32xf32>
    %275 = vector.extract_strided_slice %229 {offsets = [0, 32], sizes = [16, 32], strides = [1, 1]} : vector<16x64xf32> to vector<16x32xf32>
    %276 = vector.extract_strided_slice %234 {offsets = [0, 32], sizes = [16, 32], strides = [1, 1]} : vector<16x64xf32> to vector<16x32xf32>
    %277 = arith.mulf %275, %276 : vector<16x32xf32>
    %cst_55 = arith.constant dense<0.000000e+00> : vector<16xf32>
    %278 = vector.multi_reduction <add>, %277, %cst_55 [1] : vector<16x32xf32> to vector<16xf32>
    %279 = vector.shape_cast %278 : vector<16xf32> to vector<16x1xf32>
    %cst_56 = arith.constant 0.176776692 : f32
    %280 = vector.broadcast %cst_56 : f32 to vector<16x1xf32>
    %281 = arith.mulf %279, %280 : vector<16x1xf32>
    %282 = vector.extract_strided_slice %229 {offsets = [0, 32], sizes = [16, 32], strides = [1, 1]} : vector<16x64xf32> to vector<16x32xf32>
    %283 = vector.extract_strided_slice %237 {offsets = [0, 32], sizes = [16, 32], strides = [1, 1]} : vector<16x64xf32> to vector<16x32xf32>
    %284 = arith.mulf %282, %283 : vector<16x32xf32>
    %cst_57 = arith.constant dense<0.000000e+00> : vector<16xf32>
    %285 = vector.multi_reduction <add>, %284, %cst_57 [1] : vector<16x32xf32> to vector<16xf32>
    %286 = vector.shape_cast %285 : vector<16xf32> to vector<16x1xf32>
    %cst_58 = arith.constant 0.176776692 : f32
    %287 = vector.broadcast %cst_58 : f32 to vector<16x1xf32>
    %288 = arith.mulf %286, %287 : vector<16x1xf32>
    %289 = arith.maximumf %281, %288 : vector<16x1xf32>
    %290 = arith.subf %281, %289 : vector<16x1xf32>
    %291 = math.exp %290 : vector<16x1xf32>
    %292 = arith.subf %288, %289 : vector<16x1xf32>
    %293 = math.exp %292 : vector<16x1xf32>
    %294 = arith.addf %291, %293 : vector<16x1xf32>
    %cst_59 = arith.constant 1.000000e+00 : f32
    %295 = vector.broadcast %cst_59 : f32 to vector<16x1xf32>
    %296 = arith.divf %295, %294 : vector<16x1xf32>
    %297 = vector.extract_strided_slice %240 {offsets = [0, 32], sizes = [16, 32], strides = [1, 1]} : vector<16x64xf32> to vector<16x32xf32>
    %298 = vector.broadcast %291 : vector<16x1xf32> to vector<16x32xf32>
    %299 = arith.mulf %298, %297 : vector<16x32xf32>
    %300 = vector.extract_strided_slice %243 {offsets = [0, 32], sizes = [16, 32], strides = [1, 1]} : vector<16x64xf32> to vector<16x32xf32>
    %301 = vector.broadcast %293 : vector<16x1xf32> to vector<16x32xf32>
    %302 = arith.mulf %301, %300 : vector<16x32xf32>
    %303 = arith.addf %299, %302 : vector<16x32xf32>
    %304 = vector.broadcast %296 : vector<16x1xf32> to vector<16x32xf32>
    %305 = arith.mulf %303, %304 : vector<16x32xf32>
    %306 = tpu.concatenate %274, %305 in 1 : vector<16x32xf32>, vector<16x32xf32> -> vector<16x64xf32>
    %c0_60 = arith.constant 0 : index
    %c0_61 = arith.constant 0 : index
    %307 = vector.load %arg6[%c0_60, %c0_61] : memref<64x64xf32, #tpu.memory_space<vmem>>, vector<64x64xf32>
    %cst_62 = arith.constant dense<0.000000e+00> : vector<16x64xf32>
    %308 = tpu.matmul %306, %307, %cst_62 {dimension_numbers = #tpu.dot_dimension_numbers<[1], [0], [0], [1], [0, 0, 1, 1], [], []>} : vector<16x64xf32>, vector<64x64xf32>, vector<16x64xf32> -> vector<16x64xf32>
    %c0_63 = arith.constant 0 : index
    %c0_64 = arith.constant 0 : index
    %309 = vector.load %arg7[%c0_63, %c0_64] : memref<1x64xf32, #tpu.memory_space<vmem>>, vector<1x64xf32>
    %310 = vector.broadcast %309 : vector<1x64xf32> to vector<16x64xf32>
    %311 = arith.addf %308, %310 : vector<16x64xf32>
    %312 = vector.extract_strided_slice %311 {offsets = [0, 0], sizes = [8, 64], strides = [1, 1]} : vector<16x64xf32> to vector<8x64xf32>
    %313 = vector.extract_strided_slice %311 {offsets = [8, 0], sizes = [8, 64], strides = [1, 1]} : vector<16x64xf32> to vector<8x64xf32>
    %314 = arith.addf %312, %313 : vector<8x64xf32>
    %cst_65 = arith.constant 5.000000e-01 : f32
    %315 = vector.broadcast %cst_65 : f32 to vector<8x64xf32>
    %316 = arith.mulf %315, %314 : vector<8x64xf32>
    %c0_66 = arith.constant 0 : index
    %c0_67 = arith.constant 0 : index
    %317 = vector.load %arg8[%c0_66, %c0_67] : memref<64x2xf32, #tpu.memory_space<vmem>>, vector<64x2xf32>
    %cst_68 = arith.constant dense<0.000000e+00> : vector<8x2xf32>
    %318 = tpu.matmul %316, %317, %cst_68 {dimension_numbers = #tpu.dot_dimension_numbers<[1], [0], [0], [1], [0, 0, 1, 1], [], []>} : vector<8x64xf32>, vector<64x2xf32>, vector<8x2xf32> -> vector<8x2xf32>
    %c0_69 = arith.constant 0 : index
    %c0_70 = arith.constant 0 : index
    %319 = vector.load %arg9[%c0_69, %c0_70] : memref<1x2xf32, #tpu.memory_space<vmem>>, vector<1x2xf32>
    %320 = vector.broadcast %319 : vector<1x2xf32> to vector<8x2xf32>
    %321 = arith.addf %318, %320 : vector<8x2xf32>
    %c0_71 = arith.constant 0 : index
    %c0_72 = arith.constant 0 : index
    %322 = vector.load %arg10[%c0_71, %c0_72] : memref<8x2xf32, #tpu.memory_space<vmem>>, vector<8x2xf32>
    tpu.vector_store %arg10[%c0_71, %c0_72], %321 {strides = array<i32>} : memref<8x2xf32, #tpu.memory_space<vmem>>, vector<8x2xf32>,
    return
  }
}

</mosaic_0001>

<llo_original>
// kernel: tpu_custom_call.1
$region0: #{tpu_custom_call.1}
  #allocation0 [shape = 'u32[]', space=smem, size = 0x4, offset = 0x4, fixed_abs, tag = 'smem constant byte address 0x4 - core index']
  #allocation1 [shape = 'u32[144,128]{1,0:T(1,128)}', space=vmem, size = 0x12000, scoped, tag = 'internal scratch']
  #allocation2 [shape = 'f32[64,512]{1,0:T(8,128)}', space=vmem, size = 0x20000, scoped, tag = 'scratch operand']
  %s0 = inlined_call_operand.vmem [shape: f32[64,83], index: 0, kind: input, shape index: {}]
  %s1 = inlined_call_operand.hbm [shape: f32[83,512], index: 1, kind: input, shape index: {}]
  %s2 = inlined_call_operand.hbm [shape: f32[128,512], index: 2, kind: input, shape index: {}]
  %s3 = inlined_call_operand.vmem [shape: f32[1,512], index: 3, kind: input, shape index: {}]
  %s4 = inlined_call_operand.hbm [shape: f32[64,192], index: 4, kind: input, shape index: {}]
  %s5 = inlined_call_operand.vmem [shape: f32[1,192], index: 5, kind: input, shape index: {}]
  %s6 = inlined_call_operand.hbm [shape: f32[64,64], index: 6, kind: input, shape index: {}]
  %s7 = inlined_call_operand.vmem [shape: f32[1,64], index: 7, kind: input, shape index: {}]
  %s8 = inlined_call_operand.vmem [shape: f32[64,2], index: 8, kind: input, shape index: {}]
  %s9 = inlined_call_operand.vmem [shape: f32[1,2], index: 9, kind: input, shape index: {}]
  %s10 = inlined_call_operand.vmem [shape: f32[8,2], index: 10, kind: output, shape index: {}]
  %s11 = sld [smem:[#allocation0]]
  $region66: #{tpu_custom_call.1} parent=0
    _
  %s13 = ssub.s32 1, %s11
  %s14 = scalar_select 0, %s13, %s11
  $region1: #{tpu_custom_call.1} parent=0
    #allocation3 [shape = 'u8[180224]{0}', space=vmem, size = 0x2c000, scoped, tag = 'input window, operand 1, single buffered']
    #allocation4 [shape = 's32[1]{0}', space=sflag, size = 0x4, scoped, tag = 'scoped memory for tpu_custom_call.1']
    #allocation5 [shape = 'u8[262144]{0}', space=vmem, size = 0x40000, scoped, tag = 'input window, operand 2, single buffered']
    #allocation6 [shape = 's32[1]{0}', space=sflag, size = 0x4, scoped, tag = 'scoped memory for tpu_custom_call.1']
    #allocation7 [shape = 'u8[65536]{0}', space=vmem, size = 0x10000, scoped, tag = 'input window, operand 4, single buffered']
    #allocation8 [shape = 'u8[32768]{0}', space=vmem, size = 0x8000, scoped, tag = 'input window, operand 6, single buffered']
    #allocation9 [shape = 's32[1]{0}', space=sflag, size = 0x4, scoped, tag = 'scoped memory for tpu_custom_call.1']
    %15 = vsyncpa [#allocation4], 0
    %16 = vsyncpa [#allocation6], 0
    %17 = vsyncpa [#allocation9], 0
    // Predicated region
    $region2: #{tpu_custom_call.1} parent=1 // pred_check
      _
    $region3: #{tpu_custom_call.1} parent=1 // pred_check_branch
      %19 = sbr.rel (0) target = $region5
    $region4: #{tpu_custom_call.1} parent=1 // pred_region
      _
    $region5: #{tpu_custom_call.1} parent=1 // pred_fallthru
      _
    // Predicated region
    $region6: #{tpu_custom_call.1} parent=1 // pred_check
      _
    $region7: #{tpu_custom_call.1} parent=1 // pred_check_branch
      %21 = sbr.rel (0) target = $region9
    $region8: #{tpu_custom_call.1} parent=1 // pred_region
      %s23 = ssub.s32 5632, 5632
      %24 = vsyncadd [#allocation4], %s23
      %s25 = sshll.u32 [#allocation3], 4
      %s26 = int_to_ptr.vmem [resolvable:$true] %s25
      %31 = dma.hbm_to_vmem [thread:$0]  %s1, 5632, %s26, [#allocation4], 512, 512, 32
    $region9: #{tpu_custom_call.1} parent=1 // pred_fallthru
      _
    // Predicated region
    $region10: #{tpu_custom_call.1} parent=1 // pred_check
      _
    $region11: #{tpu_custom_call.1} parent=1 // pred_check_branch
      %33 = sbr.rel (0) target = $region13
    $region12: #{tpu_custom_call.1} parent=1 // pred_region
      %s35 = ssub.s32 8192, 8192
      %36 = vsyncadd [#allocation6], %s35
      %s37 = sshll.u32 [#allocation5], 4
      %s38 = int_to_ptr.vmem [resolvable:$true] %s37
      %43 = dma.hbm_to_vmem [thread:$0]  %s2, 8192, %s38, [#allocation6], 512, 512, 32
    $region13: #{tpu_custom_call.1} parent=1 // pred_fallthru
      _
    // Predicated region
    $region14: #{tpu_custom_call.1} parent=1 // pred_check
      _
    $region15: #{tpu_custom_call.1} parent=1 // pred_check_branch
      %45 = sbr.rel (0) target = $region17
    $region16: #{tpu_custom_call.1} parent=1 // pred_region
      _
    $region17: #{tpu_custom_call.1} parent=1 // pred_fallthru
      _
    // Predicated region
    $region18: #{tpu_custom_call.1} parent=1 // pred_check
      _
    $region19: #{tpu_custom_call.1} parent=1 // pred_check_branch
      %47 = sbr.rel (0) target = $region21
    $region20: #{tpu_custom_call.1} parent=1 // pred_region
      %s49 = ssub.s32 2048, 2048
      %50 = vsyncadd [#allocation6], %s49
      %s51 = sshll.u32 [#allocation7], 4
      %s52 = int_to_ptr.vmem [resolvable:$true] %s51
      %57 = dma.hbm_to_vmem [thread:$0]  %s4, 2048, %s52, [#allocation6], 256, 256, 16
    $region21: #{tpu_custom_call.1} parent=1 // pred_fallthru
      _
    // Predicated region
    $region22: #{tpu_custom_call.1} parent=1 // pred_check
      _
    $region23: #{tpu_custom_call.1} parent=1 // pred_check_branch
      %59 = sbr.rel (0) target = $region25
    $region24: #{tpu_custom_call.1} parent=1 // pred_region
      _
    $region25: #{tpu_custom_call.1} parent=1 // pred_fallthru
      _
    // Predicated region
    $region26: #{tpu_custom_call.1} parent=1 // pred_check
      _
    $region27: #{tpu_custom_call.1} parent=1 // pred_check_branch
      %61 = sbr.rel (0) target = $region29
    $region28: #{tpu_custom_call.1} parent=1 // pred_region
      %s63 = ssub.s32 1024, 1024
      %64 = vsyncadd [#allocation9], %s63
      %s65 = sshll.u32 [#allocation8], 4
      %s66 = int_to_ptr.vmem [resolvable:$true] %s65
      %71 = dma.hbm_to_vmem [thread:$0]  %s6, 1024, %s66, [#allocation9], 128, 128, 8
    $region29: #{tpu_custom_call.1} parent=1 // pred_fallthru
      _
    // Predicated region
    $region30: #{tpu_custom_call.1} parent=1 // pred_check
      _
    $region31: #{tpu_custom_call.1} parent=1 // pred_check_branch
      %73 = sbr.rel (0) target = $region33
    $region32: #{tpu_custom_call.1} parent=1 // pred_region
      _
    $region33: #{tpu_custom_call.1} parent=1 // pred_fallthru
      _
    // Predicated region
    $region34: #{tpu_custom_call.1} parent=1 // pred_check
      _
    $region35: #{tpu_custom_call.1} parent=1 // pred_check_branch
      %75 = sbr.rel (0) target = $region37
    $region36: #{tpu_custom_call.1} parent=1 // pred_region
      _
    $region37: #{tpu_custom_call.1} parent=1 // pred_fallthru
      _
    // Predicated region
    $region38: #{tpu_custom_call.1} parent=1 // pred_check
      _
    $region39: #{tpu_custom_call.1} parent=1 // pred_check_branch
      %77 = sbr.rel (0) target = $region41
    $region40: #{tpu_custom_call.1} parent=1 // pred_region
      _
    $region41: #{tpu_custom_call.1} parent=1 // pred_fallthru
      _
    // Predicated region
    $region42: #{tpu_custom_call.1} parent=1 // pred_check
      _
    $region43: #{tpu_custom_call.1} parent=1 // pred_check_branch
      %79 = sbr.rel (0) target = $region45
    $region44: #{tpu_custom_call.1} parent=1 // pred_region
      %80 = dma.done [#allocation4], 5632
    $region45: #{tpu_custom_call.1} parent=1 // pred_fallthru
      _
    // Predicated region
    $region46: #{tpu_custom_call.1} parent=1 // pred_check
      _
    $region47: #{tpu_custom_call.1} parent=1 // pred_check_branch
      %82 = sbr.rel (0) target = $region49
    $region48: #{tpu_custom_call.1} parent=1 // pred_region
      %83 = dma.done [#allocation6], 8192
    $region49: #{tpu_custom_call.1} parent=1 // pred_fallthru
      _
    // Predicated region
    $region50: #{tpu_custom_call.1} parent=1 // pred_check
      _
    $region51: #{tpu_custom_call.1} parent=1 // pred_check_branch
      %85 = sbr.rel (0) target = $region53
    $region52: #{tpu_custom_call.1} parent=1 // pred_region
      %86 = dma.done [#allocation6], 2048
    $region53: #{tpu_custom_call.1} parent=1 // pred_fallthru
      _
    // Predicated region
    $region54: #{tpu_custom_call.1} parent=1 // pred_check
      _
    $region55: #{tpu_custom_call.1} parent=1 // pred_check_branch
      %88 = sbr.rel (0) target = $region57
    $region56: #{tpu_custom_call.1} parent=1 // pred_region
      %89 = dma.done [#allocation9], 1024
    $region57: #{tpu_custom_call.1} parent=1 // pred_fallthru
      _
    %v90 = vld [vmem:[%s0] sm:$0xff]
    %v91 = vld [vmem:[%s0 + $0x8] sm:$0xff]
    %v92 = vld [vmem:[%s0 + $0x10] sm:$0xff]
    %v93 = vld [vmem:[%s0 + $0x18] sm:$0xff]
    %v94 = vld [vmem:[%s0 + $0x20] sm:$0xff]
    %v95 = vld [vmem:[%s0 + $0x28] sm:$0xff]
    %v96 = vld [vmem:[%s0 + $0x30] sm:$0xff]
    %v97 = vld [vmem:[%s0 + $0x38] sm:$0xff]
    %v98 = vld [vmem:[#allocation3] sm:$0xff]
    %v99 = vld [vmem:[#allocation3 + $0x8] sm:$0xff]
    %v100 = vld [vmem:[#allocation3 + $0x10] sm:$0xff]
    %v101 = vld [vmem:[#allocation3 + $0x18] sm:$0xff]
    %v102 = vld [vmem:[#allocation3 + $0x20] sm:$0xff]
    %v103 = vld [vmem:[#allocation3 + $0x28] sm:$0xff]
    %v104 = vld [vmem:[#allocation3 + $0x30] sm:$0xff]
    %v105 = vld [vmem:[#allocation3 + $0x38] sm:$0xff]
    %v106 = vld [vmem:[#allocation3 + $0x40] sm:$0xff]
    %v107 = vld [vmem:[#allocation3 + $0x48] sm:$0xff]
    %v108 = vld [vmem:[#allocation3 + $0x50] sm:$0xff]
    %v109 = vld [vmem:[#allocation3 + $0x58] sm:$0xff]
    %v110 = vld [vmem:[#allocation3 + $0x60] sm:$0xff]
    %v111 = vld [vmem:[#allocation3 + $0x68] sm:$0xff]
    %v112 = vld [vmem:[#allocation3 + $0x70] sm:$0xff]
    %v113 = vld [vmem:[#allocation3 + $0x78] sm:$0xff]
    %v114 = vld [vmem:[#allocation3 + $0x80] sm:$0xff]
    %v115 = vld [vmem:[#allocation3 + $0x88] sm:$0xff]
    %v116 = vld [vmem:[#allocation3 + $0x90] sm:$0xff]
    %v117 = vld [vmem:[#allocation3 + $0x98] sm:$0xff]
    %v118 = vld [vmem:[#allocation3 + $0xa0] sm:$0xff]
    %v119 = vld [vmem:[#allocation3 + $0xa8] sm:$0xff]
    %v120 = vld [vmem:[#allocation3 + $0xb0] sm:$0xff]
    %v121 = vld [vmem:[#allocation3 + $0xb8] sm:$0xff]
    %v122 = vld [vmem:[#allocation3 + $0xc0] sm:$0xff]
    %v123 = vld [vmem:[#allocation3 + $0xc8] sm:$0xff]
    %v124 = vld [vmem:[#allocation3 + $0xd0] sm:$0xff]
    %v125 = vld [vmem:[#allocation3 + $0xd8] sm:$0xff]
    %v126 = vld [vmem:[#allocation3 + $0xe0] sm:$0xff]
    %v127 = vld [vmem:[#allocation3 + $0xe8] sm:$0xff]
    %v128 = vld [vmem:[#allocation3 + $0xf0] sm:$0xff]
    %v129 = vld [vmem:[#allocation3 + $0xf8] sm:$0xff]
    %v130 = vld [vmem:[#allocation3 + $0x100] sm:$0xff]
    %v131 = vld [vmem:[#allocation3 + $0x108] sm:$0xff]
    %v132 = vld [vmem:[#allocation3 + $0x110] sm:$0xff]
    %v133 = vld [vmem:[#allocation3 + $0x118] sm:$0xff]
    %v134 = vld [vmem:[#allocation3 + $0x120] sm:$0xff]
    %v135 = vld [vmem:[#allocation3 + $0x128] sm:$0xff]
    %v136 = vld [vmem:[#allocation3 + $0x130] sm:$0xff]
    %v137 = vld [vmem:[#allocation3 + $0x138] sm:$0xff]
    %v138 = vld [vmem:[#allocation3 + $0x140] sm:$0x7]
    %v139 = vld [vmem:[#allocation3 + $0x148] sm:$0x7]
    %v140 = vld [vmem:[#allocation3 + $0x150] sm:$0x7]
    %v141 = vld [vmem:[#allocation3 + $0x158] sm:$0x7]
    %vm142 = vcmask 678912
    %v144 = vsel %vm142, %v90, 0
    %v147 = vsel %vm142, %v91, 0
    %v150 = vsel %vm142, %v92, 0
    %v153 = vsel %vm142, %v93, 0
    %v156 = vsel %vm142, %v94, 0
    %v159 = vsel %vm142, %v95, 0
    %v162 = vsel %vm142, %v96, 0
    %v165 = vsel %vm142, %v97, 0
    %vm167 = vcmask 1042432
    %v169 = vsel %vm167, %v138, 0
    %v172 = vsel %vm167, %v139, 0
    %v175 = vsel %vm167, %v140, 0
    %v178 = vsel %vm167, %v141, 0
    %180 = vmatprep.subr.mxu0 0.0
    %181 = vmatpush1.msra.mxu0 0.0
    %182 = vmatprep.subr.mxu0 0.0
    %183 = vmatpush1.msra.mxu0 0.0
    %184 = vmatprep.subr.mxu0 0.0
    %185 = vmatpush1.msra.mxu0 0.0
    %186 = vmatprep.subr.mxu0 0.0
    %187 = vmatpush1.msra.mxu0 0.0
    %188 = vmatprep.subr.mxu0 0.0
    %189 = vmatpush1.msra.mxu0 0.0
    %190 = vmatprep.subr.mxu0 %v172
    %191 = vmatpush1.msra.mxu0 %v169
    %192 = vmatprep.subr.mxu0 %v135
    %193 = vmatpush1.msra.mxu0 %v134
    %194 = vmatprep.subr.mxu0 %v131
    %195 = vmatpush1.msra.mxu0 %v130
    %196 = vmatprep.subr.mxu0 %v127
    %197 = vmatpush1.msra.mxu0 %v126
    %198 = vmatprep.subr.mxu0 %v123
    %199 = vmatpush1.msra.mxu0 %v122
    %200 = vmatprep.subr.mxu0 %v119
    %201 = vmatpush1.msra.mxu0 %v118
    %202 = vmatprep.subr.mxu0 %v115
    %203 = vmatpush1.msra.mxu0 %v114
    %204 = vmatprep.subr.mxu0 %v111
    %205 = vmatpush1.msra.mxu0 %v110
    %206 = vmatprep.subr.mxu0 %v107
    %207 = vmatpush1.msra.mxu0 %v106
    %208 = vmatprep.subr.mxu0 %v103
    %209 = vmatpush1.msra.mxu0 %v102
    %210 = vmatprep.subr.mxu0 %v99
    %211 = vmatpush1.msra.mxu0 %v98
    %212 = vmatprep.subr.mxu0 0.0
    %213 = vmatpush2.msra.mxu0 0.0
    %214 = vmatprep.subr.mxu0 0.0
    %215 = vmatpush2.msra.mxu0 0.0
    %216 = vmatprep.subr.mxu0 0.0
    %217 = vmatpush2.msra.mxu0 0.0
    %218 = vmatprep.subr.mxu0 0.0
    %219 = vmatpush2.msra.mxu0 0.0
    %220 = vmatprep.subr.mxu0 0.0
    %221 = vmatpush2.msra.mxu0 0.0
    %222 = vmatprep.subr.mxu0 0.0
    %223 = vmatpush2.msra.mxu0 0.0
    %224 = vmatprep.subr.mxu0 0.0
    %225 = vmatpush2.msra.mxu0 0.0
    %226 = vmatprep.subr.mxu0 0.0
    %227 = vmatpush2.msra.mxu0 0.0
    %228 = vmatprep.subr.mxu0 0.0
    %229 = vmatpush2.msra.mxu0 0.0
    %230 = vmatprep.subr.mxu0 0.0
    %231 = vmatpush2.msra.mxu0 0.0
    %232 = vmatprep.subr.mxu0 0.0
    %233 = vmatpush2.msra.mxu0 0.0
    %234 = vmatprep.subr.mxu0 0.0
    %235 = vmatpush2.msra.mxu0 0.0
    %236 = vmatprep.subr.mxu0 0.0
    %237 = vmatpush2.msra.mxu0 0.0
    %238 = vmatprep.subr.mxu0 0.0
    %239 = vmatpush2.msra.mxu0 0.0
    %240 = vmatprep.subr.mxu0 0.0
    %241 = vmatpush2.msra.mxu0 0.0
    %242 = vmatprep.subr.mxu0 0.0
    %243 = vmatpush2.msra.mxu0 0.0
    %244 = vmatprep.mubr.f32.mxu0 0.0
    %245 = vmatmul.mubr.f32.gmra.mxu0 %v144
    %v246 = vpop.f32.mrf.mxu0
    %v247 = vadd.f32 0.0, %v246
    %v248 = vpop.f32.mrf.mxu0
    %v249 = vadd.f32 0.0, %v248
    %250 = vmatprep.mubr.f32.mxu0 0.0
    %251 = vmatmul.mubr.f32.gmra.mxu0 %v147
    %v252 = vpop.f32.mrf.mxu0
    %v253 = vadd.f32 0.0, %v252
    %v254 = vpop.f32.mrf.mxu0
    %v255 = vadd.f32 0.0, %v254
    %256 = vmatprep.mubr.f32.mxu0 0.0
    %257 = vmatmul.mubr.f32.gmra.mxu0 %v150
    %v258 = vpop.f32.mrf.mxu0
    %v259 = vadd.f32 0.0, %v258
    %v260 = vpop.f32.mrf.mxu0
    %v261 = vadd.f32 0.0, %v260
    %262 = vmatprep.mubr.f32.mxu0 0.0
    %263 = vmatmul.mubr.f32.gmra.mxu0 %v153
    %v264 = vpop.f32.mrf.mxu0
    %v265 = vadd.f32 0.0, %v264
    %v266 = vpop.f32.mrf.mxu0
    %v267 = vadd.f32 0.0, %v266
    %268 = vmatprep.mubr.f32.mxu0 0.0
    %269 = vmatmul.mubr.f32.gmra.mxu0 %v156
    %v270 = vpop.f32.mrf.mxu0
    %v271 = vadd.f32 0.0, %v270
    %v272 = vpop.f32.mrf.mxu0
    %v273 = vadd.f32 0.0, %v272
    %274 = vmatprep.mubr.f32.mxu0 0.0
    %275 = vmatmul.mubr.f32.gmra.mxu0 %v159
    %v276 = vpop.f32.mrf.mxu0
    %v277 = vadd.f32 0.0, %v276
    %v278 = vpop.f32.mrf.mxu0
    %v279 = vadd.f32 0.0, %v278
    %280 = vmatprep.mubr.f32.mxu0 0.0
    %281 = vmatmul.mubr.f32.gmra.mxu0 %v162
    %v282 = vpop.f32.mrf.mxu0
    %v283 = vadd.f32 0.0, %v282
    %v284 = vpop.f32.mrf.mxu0
    %v285 = vadd.f32 0.0, %v284
    %286 = vmatprep.mubr.f32.mxu0 0.0
    %287 = vmatmul.mubr.f32.gmra.mxu0 %v165
    %v288 = vpop.f32.mrf.mxu0
    %v289 = vadd.f32 0.0, %v288
    %v290 = vpop.f32.mrf.mxu0
    %v291 = vadd.f32 0.0, %v290
    %292 = vdwg.mxu0
    %293 = vmatprep.subr.mxu0 0.0
    %294 = vmatpush1.msra.mxu0 0.0
    %295 = vmatprep.subr.mxu0 0.0
    %296 = vmatpush1.msra.mxu0 0.0
    %297 = vmatprep.subr.mxu0 0.0
    %298 = vmatpush1.msra.mxu0 0.0
    %299 = vmatprep.subr.mxu0 0.0
    %300 = vmatpush1.msra.mxu0 0.0
    %301 = vmatprep.subr.mxu0 0.0
    %302 = vmatpush1.msra.mxu0 0.0
    %303 = vmatprep.subr.mxu0 %v178
    %304 = vmatpush1.msra.mxu0 %v175
    %305 = vmatprep.subr.mxu0 %v137
    %306 = vmatpush1.msra.mxu0 %v136
    %307 = vmatprep.subr.mxu0 %v133
    %308 = vmatpush1.msra.mxu0 %v132
    %309 = vmatprep.subr.mxu0 %v129
    %310 = vmatpush1.msra.mxu0 %v128
    %311 = vmatprep.subr.mxu0 %v125
    %312 = vmatpush1.msra.mxu0 %v124
    %313 = vmatprep.subr.mxu0 %v121
    %314 = vmatpush1.msra.mxu0 %v120
    %315 = vmatprep.subr.mxu0 %v117
    %316 = vmatpush1.msra.mxu0 %v116
    %317 = vmatprep.subr.mxu0 %v113
    %318 = vmatpush1.msra.mxu0 %v112
    %319 = vmatprep.subr.mxu0 %v109
    %320 = vmatpush1.msra.mxu0 %v108
    %321 = vmatprep.subr.mxu0 %v105
    %322 = vmatpush1.msra.mxu0 %v104
    %323 = vmatprep.subr.mxu0 %v101
    %324 = vmatpush1.msra.mxu0 %v100
    %325 = vmatprep.subr.mxu0 0.0
    %326 = vmatpush2.msra.mxu0 0.0
    %327 = vmatprep.subr.mxu0 0.0
    %328 = vmatpush2.msra.mxu0 0.0
    %329 = vmatprep.subr.mxu0 0.0
    %330 = vmatpush2.msra.mxu0 0.0
    %331 = vmatprep.subr.mxu0 0.0
    %332 = vmatpush2.msra.mxu0 0.0
    %333 = vmatprep.subr.mxu0 0.0
    %334 = vmatpush2.msra.mxu0 0.0
    %335 = vmatprep.subr.mxu0 0.0
    %336 = vmatpush2.msra.mxu0 0.0
    %337 = vmatprep.subr.mxu0 0.0
    %338 = vmatpush2.msra.mxu0 0.0
    %339 = vmatprep.subr.mxu0 0.0
    %340 = vmatpush2.msra.mxu0 0.0
    %341 = vmatprep.subr.mxu0 0.0
    %342 = vmatpush2.msra.mxu0 0.0
    %343 = vmatprep.subr.mxu0 0.0
    %344 = vmatpush2.msra.mxu0 0.0
    %345 = vmatprep.subr.mxu0 0.0
    %346 = vmatpush2.msra.mxu0 0.0
    %347 = vmatprep.subr.mxu0 0.0
    %348 = vmatpush2.msra.mxu0 0.0
    %349 = vmatprep.subr.mxu0 0.0
    %350 = vmatpush2.msra.mxu0 0.0
    %351 = vmatprep.subr.mxu0 0.0
    %352 = vmatpush2.msra.mxu0 0.0
    %353 = vmatprep.subr.mxu0 0.0
    %354 = vmatpush2.msra.mxu0 0.0
    %355 = vmatprep.subr.mxu0 0.0
    %356 = vmatpush2.msra.mxu0 0.0
    %357 = vmatprep.mubr.f32.mxu0 0.0
    %358 = vmatmul.mubr.f32.gmra.mxu0 %v144
    %v359 = vpop.f32.mrf.mxu0
    %v360 = vadd.f32 0.0, %v359
    %v361 = vpop.f32.mrf.mxu0
    %v362 = vadd.f32 0.0, %v361
    %363 = vmatprep.mubr.f32.mxu0 0.0
    %364 = vmatmul.mubr.f32.gmra.mxu0 %v147
    %v365 = vpop.f32.mrf.mxu0
    %v366 = vadd.f32 0.0, %v365
    %v367 = vpop.f32.mrf.mxu0
    %v368 = vadd.f32 0.0, %v367
    %369 = vmatprep.mubr.f32.mxu0 0.0
    %370 = vmatmul.mubr.f32.gmra.mxu0 %v150
    %v371 = vpop.f32.mrf.mxu0
    %v372 = vadd.f32 0.0, %v371
    %v373 = vpop.f32.mrf.mxu0
    %v374 = vadd.f32 0.0, %v373
    %375 = vmatprep.mubr.f32.mxu0 0.0
    %376 = vmatmul.mubr.f32.gmra.mxu0 %v153
    %v377 = vpop.f32.mrf.mxu0
    %v378 = vadd.f32 0.0, %v377
    %v379 = vpop.f32.mrf.mxu0
    %v380 = vadd.f32 0.0, %v379
    %381 = vmatprep.mubr.f32.mxu0 0.0
    %382 = vmatmul.mubr.f32.gmra.mxu0 %v156
    %v383 = vpop.f32.mrf.mxu0
    %v384 = vadd.f32 0.0, %v383
    %v385 = vpop.f32.mrf.mxu0
    %v386 = vadd.f32 0.0, %v385
    %387 = vmatprep.mubr.f32.mxu0 0.0
    %388 = vmatmul.mubr.f32.gmra.mxu0 %v159
    %v389 = vpop.f32.mrf.mxu0
    %v390 = vadd.f32 0.0, %v389
    %v391 = vpop.f32.mrf.mxu0
    %v392 = vadd.f32 0.0, %v391
    %393 = vmatprep.mubr.f32.mxu0 0.0
    %394 = vmatmul.mubr.f32.gmra.mxu0 %v162
    %v395 = vpop.f32.mrf.mxu0
    %v396 = vadd.f32 0.0, %v395
    %v397 = vpop.f32.mrf.mxu0
    %v398 = vadd.f32 0.0, %v397
    %399 = vmatprep.mubr.f32.mxu0 0.0
    %400 = vmatmul.mubr.f32.gmra.mxu0 %v165
    %v401 = vpop.f32.mrf.mxu0
    %v402 = vadd.f32 0.0, %v401
    %v403 = vpop.f32.mrf.mxu0
    %v404 = vadd.f32 0.0, %v403
    %405 = vdwg.mxu0
    %406 = vst [vmem:[#allocation2] sm:$0xff] %v247
    %407 = vst [vmem:[#allocation2 + $0x8] sm:$0xff] %v249
    %408 = vst [vmem:[#allocation2 + $0x10] sm:$0xff] %v360
    %409 = vst [vmem:[#allocation2 + $0x18] sm:$0xff] %v362
    %410 = vst [vmem:[#allocation2 + $0x20] sm:$0xff] %v253
    %411 = vst [vmem:[#allocation2 + $0x28] sm:$0xff] %v255
    %412 = vst [vmem:[#allocation2 + $0x30] sm:$0xff] %v366
    %413 = vst [vmem:[#allocation2 + $0x38] sm:$0xff] %v368
    %414 = vst [vmem:[#allocation2 + $0x40] sm:$0xff] %v259
    %415 = vst [vmem:[#allocation2 + $0x48] sm:$0xff] %v261
    %416 = vst [vmem:[#allocation2 + $0x50] sm:$0xff] %v372
    %417 = vst [vmem:[#allocation2 + $0x58] sm:$0xff] %v374
    %418 = vst [vmem:[#allocation2 + $0x60] sm:$0xff] %v265
    %419 = vst [vmem:[#allocation2 + $0x68] sm:$0xff] %v267
    %420 = vst [vmem:[#allocation2 + $0x70] sm:$0xff] %v378
    %421 = vst [vmem:[#allocation2 + $0x78] sm:$0xff] %v380
    %422 = vst [vmem:[#allocation2 + $0x80] sm:$0xff] %v271
    %423 = vst [vmem:[#allocation2 + $0x88] sm:$0xff] %v273
    %424 = vst [vmem:[#allocation2 + $0x90] sm:$0xff] %v384
    %425 = vst [vmem:[#allocation2 + $0x98] sm:$0xff] %v386
    %426 = vst [vmem:[#allocation2 + $0xa0] sm:$0xff] %v277
    %427 = vst [vmem:[#allocation2 + $0xa8] sm:$0xff] %v279
    %428 = vst [vmem:[#allocation2 + $0xb0] sm:$0xff] %v390
    %429 = vst [vmem:[#allocation2 + $0xb8] sm:$0xff] %v392
    %430 = vst [vmem:[#allocation2 + $0xc0] sm:$0xff] %v283
    %431 = vst [vmem:[#allocation2 + $0xc8] sm:$0xff] %v285
    %432 = vst [vmem:[#allocation2 + $0xd0] sm:$0xff] %v396
    %433 = vst [vmem:[#allocation2 + $0xd8] sm:$0xff] %v398
    %434 = vst [vmem:[#allocation2 + $0xe0] sm:$0xff] %v289
    %435 = vst [vmem:[#allocation2 + $0xe8] sm:$0xff] %v291
    %436 = vst [vmem:[#allocation2 + $0xf0] sm:$0xff] %v402
    %437 = vst [vmem:[#allocation2 + $0xf8] sm:$0xff] %v404
    %v438 = vld [vmem:[#allocation5] sm:$0xff]
    %v439 = vld [vmem:[#allocation5 + $0x8] sm:$0xff]
    %v440 = vld [vmem:[#allocation5 + $0x10] sm:$0xff]
    %v441 = vld [vmem:[#allocation5 + $0x18] sm:$0xff]
    %v442 = vld [vmem:[#allocation5 + $0x20] sm:$0xff]
    %v443 = vld [vmem:[#allocation5 + $0x28] sm:$0xff]
    %v444 = vld [vmem:[#allocation5 + $0x30] sm:$0xff]
    %v445 = vld [vmem:[#allocation5 + $0x38] sm:$0xff]
    %v446 = vld [vmem:[#allocation5 + $0x40] sm:$0xff]
    %v447 = vld [vmem:[#allocation5 + $0x48] sm:$0xff]
    %v448 = vld [vmem:[#allocation5 + $0x50] sm:$0xff]
    %v449 = vld [vmem:[#allocation5 + $0x58] sm:$0xff]
    %v450 = vld [vmem:[#allocation5 + $0x60] sm:$0xff]
    %v451 = vld [vmem:[#allocation5 + $0x68] sm:$0xff]
    %v452 = vld [vmem:[#allocation5 + $0x70] sm:$0xff]
    %v453 = vld [vmem:[#allocation5 + $0x78] sm:$0xff]
    %v454 = vld [vmem:[#allocation5 + $0x80] sm:$0xff]
    %v455 = vld [vmem:[#allocation5 + $0x88] sm:$0xff]
    %v456 = vld [vmem:[#allocation5 + $0x90] sm:$0xff]
    %v457 = vld [vmem:[#allocation5 + $0x98] sm:$0xff]
    %v458 = vld [vmem:[#allocation5 + $0xa0] sm:$0xff]
    %v459 = vld [vmem:[#allocation5 + $0xa8] sm:$0xff]
    %v460 = vld [vmem:[#allocation5 + $0xb0] sm:$0xff]
    %v461 = vld [vmem:[#allocation5 + $0xb8] sm:$0xff]
    %v462 = vld [vmem:[#allocation5 + $0xc0] sm:$0xff]
    %v463 = vld [vmem:[#allocation5 + $0xc8] sm:$0xff]
    %v464 = vld [vmem:[#allocation5 + $0xd0] sm:$0xff]
    %v465 = vld [vmem:[#allocation5 + $0xd8] sm:$0xff]
    %v466 = vld [vmem:[#allocation5 + $0xe0] sm:$0xff]
    %v467 = vld [vmem:[#allocation5 + $0xe8] sm:$0xff]
    %v468 = vld [vmem:[#allocation5 + $0xf0] sm:$0xff]
    %v469 = vld [vmem:[#allocation5 + $0xf8] sm:$0xff]
    %v470 = vld [vmem:[#allocation5 + $0x100] sm:$0xff]
    %v471 = vld [vmem:[#allocation5 + $0x108] sm:$0xff]
    %v472 = vld [vmem:[#allocation5 + $0x110] sm:$0xff]
    %v473 = vld [vmem:[#allocation5 + $0x118] sm:$0xff]
    %v474 = vld [vmem:[#allocation5 + $0x120] sm:$0xff]
    %v475 = vld [vmem:[#allocation5 + $0x128] sm:$0xff]
    %v476 = vld [vmem:[#allocation5 + $0x130] sm:$0xff]
    %v477 = vld [vmem:[#allocation5 + $0x138] sm:$0xff]
    %v478 = vld [vmem:[#allocation5 + $0x140] sm:$0xff]
    %v479 = vld [vmem:[#allocation5 + $0x148] sm:$0xff]
    %v480 = vld [vmem:[#allocation5 + $0x150] sm:$0xff]
    %v481 = vld [vmem:[#allocation5 + $0x158] sm:$0xff]
    %v482 = vld [vmem:[#allocation5 + $0x160] sm:$0xff]
    %v483 = vld [vmem:[#allocation5 + $0x168] sm:$0xff]
    %v484 = vld [vmem:[#allocation5 + $0x170] sm:$0xff]
    %v485 = vld [vmem:[#allocation5 + $0x178] sm:$0xff]
    %v486 = vld [vmem:[#allocation5 + $0x180] sm:$0xff]
    %v487 = vld [vmem:[#allocation5 + $0x188] sm:$0xff]
    %v488 = vld [vmem:[#allocation5 + $0x190] sm:$0xff]
    %v489 = vld [vmem:[#allocation5 + $0x198] sm:$0xff]
    %v490 = vld [vmem:[#allocation5 + $0x1a0] sm:$0xff]
    %v491 = vld [vmem:[#allocation5 + $0x1a8] sm:$0xff]
    %v492 = vld [vmem:[#allocation5 + $0x1b0] sm:$0xff]
    %v493 = vld [vmem:[#allocation5 + $0x1b8] sm:$0xff]
    %v494 = vld [vmem:[#allocation5 + $0x1c0] sm:$0xff]
    %v495 = vld [vmem:[#allocation5 + $0x1c8] sm:$0xff]
    %v496 = vld [vmem:[#allocation5 + $0x1d0] sm:$0xff]
    %v497 = vld [vmem:[#allocation5 + $0x1d8] sm:$0xff]
    %v498 = vld [vmem:[#allocation5 + $0x1e0] sm:$0xff]
    %v499 = vld [vmem:[#allocation5 + $0x1e8] sm:$0xff]
    %v500 = vld [vmem:[#allocation5 + $0x1f0] sm:$0xff]
    %v501 = vld [vmem:[#allocation5 + $0x1f8] sm:$0xff]
    %v502 = vld [vmem:[%s3] sm:$0xf]
    %v503 = vlaneseq
    %v504 = vand.u32 %v503, 127
    %vm505 = vcmp.lt.s32.totalorder %v504, 64
    %v506 = vsel %vm505, 1, 0
    %v507 = vcvt.s32.f32 %v506
    %s508 = smul.u32 0, 4
    %s509 = smul.addr %s508, 8
    %s510 = scalar_lea.vmem [#allocation2], %s509
    %v511 = vld [vmem:[%s510] sm:$0xff]
    %v512 = vld [vmem:[%s510 + $0x8] sm:$0xff]
    %v513 = vld [vmem:[%s510 + $0x10] sm:$0xff]
    %v514 = vld [vmem:[%s510 + $0x18] sm:$0xff]
    %515 = vmatprep.subr.mxu0 %v499
    %516 = vmatpush1.msra.mxu0 %v498
    %517 = vmatprep.subr.mxu0 %v495
    %518 = vmatpush1.msra.mxu0 %v494
    %519 = vmatprep.subr.mxu0 %v491
    %520 = vmatpush1.msra.mxu0 %v490
    %521 = vmatprep.subr.mxu0 %v487
    %522 = vmatpush1.msra.mxu0 %v486
    %523 = vmatprep.subr.mxu0 %v483
    %524 = vmatpush1.msra.mxu0 %v482
    %525 = vmatprep.subr.mxu0 %v479
    %526 = vmatpush1.msra.mxu0 %v478
    %527 = vmatprep.subr.mxu0 %v475
    %528 = vmatpush1.msra.mxu0 %v474
    %529 = vmatprep.subr.mxu0 %v471
    %530 = vmatpush1.msra.mxu0 %v470
    %531 = vmatprep.subr.mxu0 %v467
    %532 = vmatpush1.msra.mxu0 %v466
    %533 = vmatprep.subr.mxu0 %v463
    %534 = vmatpush1.msra.mxu0 %v462
    %535 = vmatprep.subr.mxu0 %v459
    %536 = vmatpush1.msra.mxu0 %v458
    %537 = vmatprep.subr.mxu0 %v455
    %538 = vmatpush1.msra.mxu0 %v454
    %539 = vmatprep.subr.mxu0 %v451
    %540 = vmatpush1.msra.mxu0 %v450
    %541 = vmatprep.subr.mxu0 %v447
    %542 = vmatpush1.msra.mxu0 %v446
    %543 = vmatprep.subr.mxu0 %v443
    %544 = vmatpush1.msra.mxu0 %v442
    %545 = vmatprep.subr.mxu0 %v439
    %546 = vmatpush1.msra.mxu0 %v438
    %547 = vmatprep.subr.mxu0 0.0
    %548 = vmatpush2.msra.mxu0 0.0
    %549 = vmatprep.subr.mxu0 0.0
    %550 = vmatpush2.msra.mxu0 0.0
    %551 = vmatprep.subr.mxu0 0.0
    %552 = vmatpush2.msra.mxu0 0.0
    %553 = vmatprep.subr.mxu0 0.0
    %554 = vmatpush2.msra.mxu0 0.0
    %555 = vmatprep.subr.mxu0 0.0
    %556 = vmatpush2.msra.mxu0 0.0
    %557 = vmatprep.subr.mxu0 0.0
    %558 = vmatpush2.msra.mxu0 0.0
    %559 = vmatprep.subr.mxu0 0.0
    %560 = vmatpush2.msra.mxu0 0.0
    %561 = vmatprep.subr.mxu0 0.0
    %562 = vmatpush2.msra.mxu0 0.0
    %563 = vmatprep.subr.mxu0 0.0
    %564 = vmatpush2.msra.mxu0 0.0
    %565 = vmatprep.subr.mxu0 0.0
    %566 = vmatpush2.msra.mxu0 0.0
    %567 = vmatprep.subr.mxu0 0.0
    %568 = vmatpush2.msra.mxu0 0.0
    %569 = vmatprep.subr.mxu0 0.0
    %570 = vmatpush2.msra.mxu0 0.0
    %571 = vmatprep.subr.mxu0 0.0
    %572 = vmatpush2.msra.mxu0 0.0
    %573 = vmatprep.subr.mxu0 0.0
    %574 = vmatpush2.msra.mxu0 0.0
    %575 = vmatprep.subr.mxu0 0.0
    %576 = vmatpush2.msra.mxu0 0.0
    %577 = vmatprep.subr.mxu0 0.0
    %578 = vmatpush2.msra.mxu0 0.0
    %579 = vmatprep.mubr.f32.mxu0 0.0
    %580 = vmatmul.mubr.f32.gmra.mxu0 0.0
    %v581 = vpop.f32.mrf.mxu0
    %v582 = vadd.f32 0.0, %v581
    %v583 = vpop.f32.mrf.mxu0
    %v584 = vadd.f32 0.0, %v583
    %585 = vdwg.mxu0
    %586 = vmatprep.subr.mxu0 %v501
    %587 = vmatpush1.msra.mxu0 %v500
    %588 = vmatprep.subr.mxu0 %v497
    %589 = vmatpush1.msra.mxu0 %v496
    %590 = vmatprep.subr.mxu0 %v493
    %591 = vmatpush1.msra.mxu0 %v492
    %592 = vmatprep.subr.mxu0 %v489
    %593 = vmatpush1.msra.mxu0 %v488
    %594 = vmatprep.subr.mxu0 %v485
    %595 = vmatpush1.msra.mxu0 %v484
    %596 = vmatprep.subr.mxu0 %v481
    %597 = vmatpush1.msra.mxu0 %v480
    %598 = vmatprep.subr.mxu0 %v477
    %599 = vmatpush1.msra.mxu0 %v476
    %600 = vmatprep.subr.mxu0 %v473
    %601 = vmatpush1.msra.mxu0 %v472
    %602 = vmatprep.subr.mxu0 %v469
    %603 = vmatpush1.msra.mxu0 %v468
    %604 = vmatprep.subr.mxu0 %v465
    %605 = vmatpush1.msra.mxu0 %v464
    %606 = vmatprep.subr.mxu0 %v461
    %607 = vmatpush1.msra.mxu0 %v460
    %608 = vmatprep.subr.mxu0 %v457
    %609 = vmatpush1.msra.mxu0 %v456
    %610 = vmatprep.subr.mxu0 %v453
    %611 = vmatpush1.msra.mxu0 %v452
    %612 = vmatprep.subr.mxu0 %v449
    %613 = vmatpush1.msra.mxu0 %v448
    %614 = vmatprep.subr.mxu0 %v445
    %615 = vmatpush1.msra.mxu0 %v444
    %616 = vmatprep.subr.mxu0 %v441
    %617 = vmatpush1.msra.mxu0 %v440
    %618 = vmatprep.subr.mxu0 0.0
    %619 = vmatpush2.msra.mxu0 0.0
    %620 = vmatprep.subr.mxu0 0.0
    %621 = vmatpush2.msra.mxu0 0.0
    %622 = vmatprep.subr.mxu0 0.0
    %623 = vmatpush2.msra.mxu0 0.0
    %624 = vmatprep.subr.mxu0 0.0
    %625 = vmatpush2.msra.mxu0 0.0
    %626 = vmatprep.subr.mxu0 0.0
    %627 = vmatpush2.msra.mxu0 0.0
    %628 = vmatprep.subr.mxu0 0.0
    %629 = vmatpush2.msra.mxu0 0.0
    %630 = vmatprep.subr.mxu0 0.0
    %631 = vmatpush2.msra.mxu0 0.0
    %632 = vmatprep.subr.mxu0 0.0
    %633 = vmatpush2.msra.mxu0 0.0
    %634 = vmatprep.subr.mxu0 0.0
    %635 = vmatpush2.msra.mxu0 0.0
    %636 = vmatprep.subr.mxu0 0.0
    %637 = vmatpush2.msra.mxu0 0.0
    %638 = vmatprep.subr.mxu0 0.0
    %639 = vmatpush2.msra.mxu0 0.0
    %640 = vmatprep.subr.mxu0 0.0
    %641 = vmatpush2.msra.mxu0 0.0
    %642 = vmatprep.subr.mxu0 0.0
    %643 = vmatpush2.msra.mxu0 0.0
    %644 = vmatprep.subr.mxu0 0.0
    %645 = vmatpush2.msra.mxu0 0.0
    %646 = vmatprep.subr.mxu0 0.0
    %647 = vmatpush2.msra.mxu0 0.0
    %648 = vmatprep.subr.mxu0 0.0
    %649 = vmatpush2.msra.mxu0 0.0
    %650 = vmatprep.mubr.f32.mxu0 0.0
    %651 = vmatmul.mubr.f32.gmra.mxu0 0.0
    %v652 = vpop.f32.mrf.mxu0
    %v653 = vadd.f32 0.0, %v652
    %v654 = vpop.f32.mrf.mxu0
    %v655 = vadd.f32 0.0, %v654
    %656 = vdwg.mxu0
    %v657 = vadd.f32 %v511, %v582
    %v658 = vadd.f32 %v512, %v584
    %v659 = vadd.f32 %v513, %v653
    %v660 = vadd.f32 %v514, %v655
    %v662 = vlaneseq
    %v663 = vshrl.u32 %v662, 7
    %v664 = vsub.s32 0, %v663
    %v665 = vrot.slane %v502, %v664
    %v666 = vlaneseq
    %v667 = vshrl.u32 %v666, 7
    %v668 = vsub.s32 1, %v667
    %v669 = vrot.slane %v502, %v668
    %v670 = vlaneseq
    %v671 = vshrl.u32 %v670, 7
    %v672 = vsub.s32 2, %v671
    %v673 = vrot.slane %v502, %v672
    %v674 = vlaneseq
    %v675 = vshrl.u32 %v674, 7
    %v676 = vsub.s32 3, %v675
    %v677 = vrot.slane %v502, %v676
    %v682 = vadd.f32 %v657, %v665
    %v683 = vadd.f32 %v658, %v669
    %v684 = vadd.f32 %v659, %v673
    %v685 = vadd.f32 %v660, %v677
    %v686 = vxor.u32 %v682, 2147483648
    %v687 = vxor.u32 %v683, 2147483648
    %v688 = vxor.u32 %v684, 2147483648
    %v689 = vmul.f32 %v686, 1.442695
    %v690 = vpow.pop %v689
    %v691 = vmul.f32 %v687, 1.442695
    %v692 = vpow.pop %v691
    %v693 = vmul.f32 %v688, 1.442695
    %v694 = vpow.pop %v693
    %v695 = vadd.f32 %v690, 1.0
    %v696 = vadd.f32 %v692, 1.0
    %v697 = vadd.f32 %v694, 1.0
    %v698 = vrcp.pop %v695
    %v699 = vmul.f32 1.0, %v698
    %v700 = vrcp.pop %v696
    %v701 = vmul.f32 1.0, %v700
    %v702 = vrcp.pop %v697
    %v703 = vmul.f32 1.0, %v702
    %v704 = vtanh.pop %v685
    %v705 = vmul.f32 %v701, 0.0
    %v706 = vmul.f32 %v699, %v704
    %v707 = vadd.f32 %v705, %v706
    %v708 = vtanh.pop %v707
    %v709 = vmul.f32 %v703, %v708
    %v710 = vadd.f32 %v709, 0.0
    %s711 = smul.u32 1, 4
    %s712 = smul.addr %s711, 8
    %s713 = scalar_lea.vmem [#allocation2], %s712
    %v714 = vld [vmem:[%s713] sm:$0xff]
    %v715 = vld [vmem:[%s713 + $0x8] sm:$0xff]
    %v716 = vld [vmem:[%s713 + $0x10] sm:$0xff]
    %v717 = vld [vmem:[%s713 + $0x18] sm:$0xff]
    %718 = vmatprep.subr.mxu0 %v499
    %719 = vmatpush1.msra.mxu0 %v498
    %720 = vmatprep.subr.mxu0 %v495
    %721 = vmatpush1.msra.mxu0 %v494
    %722 = vmatprep.subr.mxu0 %v491
    %723 = vmatpush1.msra.mxu0 %v490
    %724 = vmatprep.subr.mxu0 %v487
    %725 = vmatpush1.msra.mxu0 %v486
    %726 = vmatprep.subr.mxu0 %v483
    %727 = vmatpush1.msra.mxu0 %v482
    %728 = vmatprep.subr.mxu0 %v479
    %729 = vmatpush1.msra.mxu0 %v478
    %730 = vmatprep.subr.mxu0 %v475
    %731 = vmatpush1.msra.mxu0 %v474
    %732 = vmatprep.subr.mxu0 %v471
    %733 = vmatpush1.msra.mxu0 %v470
    %734 = vmatprep.subr.mxu0 %v467
    %735 = vmatpush1.msra.mxu0 %v466
    %736 = vmatprep.subr.mxu0 %v463
    %737 = vmatpush1.msra.mxu0 %v462
    %738 = vmatprep.subr.mxu0 %v459
    %739 = vmatpush1.msra.mxu0 %v458
    %740 = vmatprep.subr.mxu0 %v455
    %741 = vmatpush1.msra.mxu0 %v454
    %742 = vmatprep.subr.mxu0 %v451
    %743 = vmatpush1.msra.mxu0 %v450
    %744 = vmatprep.subr.mxu0 %v447
    %745 = vmatpush1.msra.mxu0 %v446
    %746 = vmatprep.subr.mxu0 %v443
    %747 = vmatpush1.msra.mxu0 %v442
    %748 = vmatprep.subr.mxu0 %v439
    %749 = vmatpush1.msra.mxu0 %v438
    %750 = vmatprep.subr.mxu0 0.0
    %751 = vmatpush2.msra.mxu0 0.0
    %752 = vmatprep.subr.mxu0 0.0
    %753 = vmatpush2.msra.mxu0 0.0
    %754 = vmatprep.subr.mxu0 0.0
    %755 = vmatpush2.msra.mxu0 0.0
    %756 = vmatprep.subr.mxu0 0.0
    %757 = vmatpush2.msra.mxu0 0.0
    %758 = vmatprep.subr.mxu0 0.0
    %759 = vmatpush2.msra.mxu0 0.0
    %760 = vmatprep.subr.mxu0 0.0
    %761 = vmatpush2.msra.mxu0 0.0
    %762 = vmatprep.subr.mxu0 0.0
    %763 = vmatpush2.msra.mxu0 0.0
    %764 = vmatprep.subr.mxu0 0.0
    %765 = vmatpush2.msra.mxu0 0.0
    %766 = vmatprep.subr.mxu0 0.0
    %767 = vmatpush2.msra.mxu0 0.0
    %768 = vmatprep.subr.mxu0 0.0
    %769 = vmatpush2.msra.mxu0 0.0
    %770 = vmatprep.subr.mxu0 0.0
    %771 = vmatpush2.msra.mxu0 0.0
    %772 = vmatprep.subr.mxu0 0.0
    %773 = vmatpush2.msra.mxu0 0.0
    %774 = vmatprep.subr.mxu0 0.0
    %775 = vmatpush2.msra.mxu0 0.0
    %776 = vmatprep.subr.mxu0 0.0
    %777 = vmatpush2.msra.mxu0 0.0
    %778 = vmatprep.subr.mxu0 0.0
    %779 = vmatpush2.msra.mxu0 0.0
    %780 = vmatprep.subr.mxu0 0.0
    %781 = vmatpush2.msra.mxu0 0.0
    %782 = vmatprep.mubr.f32.mxu0 0.0
    %783 = vmatmul.mubr.f32.gmra.mxu0 %v709
    %v784 = vpop.f32.mrf.mxu0
    %v785 = vadd.f32 0.0, %v784
    %v786 = vpop.f32.mrf.mxu0
    %v787 = vadd.f32 0.0, %v786
    %788 = vdwg.mxu0
    %789 = vmatprep.subr.mxu0 %v501
    %790 = vmatpush1.msra.mxu0 %v500
    %791 = vmatprep.subr.mxu0 %v497
    %792 = vmatpush1.msra.mxu0 %v496
    %793 = vmatprep.subr.mxu0 %v493
    %794 = vmatpush1.msra.mxu0 %v492
    %795 = vmatprep.subr.mxu0 %v489
    %796 = vmatpush1.msra.mxu0 %v488
    %797 = vmatprep.subr.mxu0 %v485
    %798 = vmatpush1.msra.mxu0 %v484
    %799 = vmatprep.subr.mxu0 %v481
    %800 = vmatpush1.msra.mxu0 %v480
    %801 = vmatprep.subr.mxu0 %v477
    %802 = vmatpush1.msra.mxu0 %v476
    %803 = vmatprep.subr.mxu0 %v473
    %804 = vmatpush1.msra.mxu0 %v472
    %805 = vmatprep.subr.mxu0 %v469
    %806 = vmatpush1.msra.mxu0 %v468
    %807 = vmatprep.subr.mxu0 %v465
    %808 = vmatpush1.msra.mxu0 %v464
    %809 = vmatprep.subr.mxu0 %v461
    %810 = vmatpush1.msra.mxu0 %v460
    %811 = vmatprep.subr.mxu0 %v457
    %812 = vmatpush1.msra.mxu0 %v456
    %813 = vmatprep.subr.mxu0 %v453
    %814 = vmatpush1.msra.mxu0 %v452
    %815 = vmatprep.subr.mxu0 %v449
    %816 = vmatpush1.msra.mxu0 %v448
    %817 = vmatprep.subr.mxu0 %v445
    %818 = vmatpush1.msra.mxu0 %v444
    %819 = vmatprep.subr.mxu0 %v441
    %820 = vmatpush1.msra.mxu0 %v440
    %821 = vmatprep.subr.mxu0 0.0
    %822 = vmatpush2.msra.mxu0 0.0
    %823 = vmatprep.subr.mxu0 0.0
    %824 = vmatpush2.msra.mxu0 0.0
    %825 = vmatprep.subr.mxu0 0.0
    %826 = vmatpush2.msra.mxu0 0.0
    %827 = vmatprep.subr.mxu0 0.0
    %828 = vmatpush2.msra.mxu0 0.0
    %829 = vmatprep.subr.mxu0 0.0
    %830 = vmatpush2.msra.mxu0 0.0
    %831 = vmatprep.subr.mxu0 0.0
    %832 = vmatpush2.msra.mxu0 0.0
    %833 = vmatprep.subr.mxu0 0.0
    %834 = vmatpush2.msra.mxu0 0.0
    %835 = vmatprep.subr.mxu0 0.0
    %836 = vmatpush2.msra.mxu0 0.0
    %837 = vmatprep.subr.mxu0 0.0
    %838 = vmatpush2.msra.mxu0 0.0
    %839 = vmatprep.subr.mxu0 0.0
    %840 = vmatpush2.msra.mxu0 0.0
    %841 = vmatprep.subr.mxu0 0.0
    %842 = vmatpush2.msra.mxu0 0.0
    %843 = vmatprep.subr.mxu0 0.0
    %844 = vmatpush2.msra.mxu0 0.0
    %845 = vmatprep.subr.mxu0 0.0
    %846 = vmatpush2.msra.mxu0 0.0
    %847 = vmatprep.subr.mxu0 0.0
    %848 = vmatpush2.msra.mxu0 0.0
    %849 = vmatprep.subr.mxu0 0.0
    %850 = vmatpush2.msra.mxu0 0.0
    %851 = vmatprep.subr.mxu0 0.0
    %852 = vmatpush2.msra.mxu0 0.0
    %853 = vmatprep.mubr.f32.mxu0 0.0
    %854 = vmatmul.mubr.f32.gmra.mxu0 %v709
    %v855 = vpop.f32.mrf.mxu0
    %v856 = vadd.f32 0.0, %v855
    %v857 = vpop.f32.mrf.mxu0
    %v858 = vadd.f32 0.0, %v857
    %859 = vdwg.mxu0
    %v860 = vadd.f32 %v714, %v785
    %v861 = vadd.f32 %v715, %v787
    %v862 = vadd.f32 %v716, %v856
    %v863 = vadd.f32 %v717, %v858
    %v864 = vadd.f32 %v860, %v665
    %v865 = vadd.f32 %v861, %v669
    %v866 = vadd.f32 %v862, %v673
    %v867 = vadd.f32 %v863, %v677
    %v868 = vxor.u32 %v864, 2147483648
    %v869 = vxor.u32 %v865, 2147483648
    %v870 = vxor.u32 %v866, 2147483648
    %v871 = vmul.f32 %v868, 1.442695
    %v872 = vpow.pop %v871
    %v873 = vmul.f32 %v869, 1.442695
    %v874 = vpow.pop %v873
    %v875 = vmul.f32 %v870, 1.442695
    %v876 = vpow.pop %v875
    %v877 = vadd.f32 %v872, 1.0
    %v878 = vadd.f32 %v874, 1.0
    %v879 = vadd.f32 %v876, 1.0
    %v880 = vrcp.pop %v877
    %v881 = vmul.f32 1.0, %v880
    %v882 = vrcp.pop %v878
    %v883 = vmul.f32 1.0, %v882
    %v884 = vrcp.pop %v879
    %v885 = vmul.f32 1.0, %v884
    %v886 = vtanh.pop %v867
    %v887 = vmul.f32 %v883, %v707
    %v888 = vmul.f32 %v881, %v886
    %v889 = vadd.f32 %v887, %v888
    %v890 = vtanh.pop %v889
    %v891 = vmul.f32 %v885, %v890
    %v892 = vadd.f32 %v710, %v891
    %s893 = smul.u32 2, 4
    %s894 = smul.addr %s893, 8
    %s895 = scalar_lea.vmem [#allocation2], %s894
    %v896 = vld [vmem:[%s895] sm:$0xff]
    %v897 = vld [vmem:[%s895 + $0x8] sm:$0xff]
    %v898 = vld [vmem:[%s895 + $0x10] sm:$0xff]
    %v899 = vld [vmem:[%s895 + $0x18] sm:$0xff]
    %900 = vmatprep.subr.mxu0 %v499
    %901 = vmatpush1.msra.mxu0 %v498
    %902 = vmatprep.subr.mxu0 %v495
    %903 = vmatpush1.msra.mxu0 %v494
    %904 = vmatprep.subr.mxu0 %v491
    %905 = vmatpush1.msra.mxu0 %v490
    %906 = vmatprep.subr.mxu0 %v487
    %907 = vmatpush1.msra.mxu0 %v486
    %908 = vmatprep.subr.mxu0 %v483
    %909 = vmatpush1.msra.mxu0 %v482
    %910 = vmatprep.subr.mxu0 %v479
    %911 = vmatpush1.msra.mxu0 %v478
    %912 = vmatprep.subr.mxu0 %v475
    %913 = vmatpush1.msra.mxu0 %v474
    %914 = vmatprep.subr.mxu0 %v471
    %915 = vmatpush1.msra.mxu0 %v470
    %916 = vmatprep.subr.mxu0 %v467
    %917 = vmatpush1.msra.mxu0 %v466
    %918 = vmatprep.subr.mxu0 %v463
    %919 = vmatpush1.msra.mxu0 %v462
    %920 = vmatprep.subr.mxu0 %v459
    %921 = vmatpush1.msra.mxu0 %v458
    %922 = vmatprep.subr.mxu0 %v455
    %923 = vmatpush1.msra.mxu0 %v454
    %924 = vmatprep.subr.mxu0 %v451
    %925 = vmatpush1.msra.mxu0 %v450
    %926 = vmatprep.subr.mxu0 %v447
    %927 = vmatpush1.msra.mxu0 %v446
    %928 = vmatprep.subr.mxu0 %v443
    %929 = vmatpush1.msra.mxu0 %v442
    %930 = vmatprep.subr.mxu0 %v439
    %931 = vmatpush1.msra.mxu0 %v438
    %932 = vmatprep.subr.mxu0 0.0
    %933 = vmatpush2.msra.mxu0 0.0
    %934 = vmatprep.subr.mxu0 0.0
    %935 = vmatpush2.msra.mxu0 0.0
    %936 = vmatprep.subr.mxu0 0.0
    %937 = vmatpush2.msra.mxu0 0.0
    %938 = vmatprep.subr.mxu0 0.0
    %939 = vmatpush2.msra.mxu0 0.0
    %940 = vmatprep.subr.mxu0 0.0
    %941 = vmatpush2.msra.mxu0 0.0
    %942 = vmatprep.subr.mxu0 0.0
    %943 = vmatpush2.msra.mxu0 0.0
    %944 = vmatprep.subr.mxu0 0.0
    %945 = vmatpush2.msra.mxu0 0.0
    %946 = vmatprep.subr.mxu0 0.0
    %947 = vmatpush2.msra.mxu0 0.0
    %948 = vmatprep.subr.mxu0 0.0
    %949 = vmatpush2.msra.mxu0 0.0
    %950 = vmatprep.subr.mxu0 0.0
    %951 = vmatpush2.msra.mxu0 0.0
    %952 = vmatprep.subr.mxu0 0.0
    %953 = vmatpush2.msra.mxu0 0.0
    %954 = vmatprep.subr.mxu0 0.0
    %955 = vmatpush2.msra.mxu0 0.0
    %956 = vmatprep.subr.mxu0 0.0
    %957 = vmatpush2.msra.mxu0 0.0
    %958 = vmatprep.subr.mxu0 0.0
    %959 = vmatpush2.msra.mxu0 0.0
    %960 = vmatprep.subr.mxu0 0.0
    %961 = vmatpush2.msra.mxu0 0.0
    %962 = vmatprep.subr.mxu0 0.0
    %963 = vmatpush2.msra.mxu0 0.0
    %964 = vmatprep.mubr.f32.mxu0 0.0
    %965 = vmatmul.mubr.f32.gmra.mxu0 %v891
    %v966 = vpop.f32.mrf.mxu0
    %v967 = vadd.f32 0.0, %v966
    %v968 = vpop.f32.mrf.mxu0
    %v969 = vadd.f32 0.0, %v968
    %970 = vdwg.mxu0
    %971 = vmatprep.subr.mxu0 %v501
    %972 = vmatpush1.msra.mxu0 %v500
    %973 = vmatprep.subr.mxu0 %v497
    %974 = vmatpush1.msra.mxu0 %v496
    %975 = vmatprep.subr.mxu0 %v493
    %976 = vmatpush1.msra.mxu0 %v492
    %977 = vmatprep.subr.mxu0 %v489
    %978 = vmatpush1.msra.mxu0 %v488
    %979 = vmatprep.subr.mxu0 %v485
    %980 = vmatpush1.msra.mxu0 %v484
    %981 = vmatprep.subr.mxu0 %v481
    %982 = vmatpush1.msra.mxu0 %v480
    %983 = vmatprep.subr.mxu0 %v477
    %984 = vmatpush1.msra.mxu0 %v476
    %985 = vmatprep.subr.mxu0 %v473
    %986 = vmatpush1.msra.mxu0 %v472
    %987 = vmatprep.subr.mxu0 %v469
    %988 = vmatpush1.msra.mxu0 %v468
    %989 = vmatprep.subr.mxu0 %v465
    %990 = vmatpush1.msra.mxu0 %v464
    %991 = vmatprep.subr.mxu0 %v461
    %992 = vmatpush1.msra.mxu0 %v460
    %993 = vmatprep.subr.mxu0 %v457
    %994 = vmatpush1.msra.mxu0 %v456
    %995 = vmatprep.subr.mxu0 %v453
    %996 = vmatpush1.msra.mxu0 %v452
    %997 = vmatprep.subr.mxu0 %v449
    %998 = vmatpush1.msra.mxu0 %v448
    %999 = vmatprep.subr.mxu0 %v445
    %1000 = vmatpush1.msra.mxu0 %v444
    %1001 = vmatprep.subr.mxu0 %v441
    %1002 = vmatpush1.msra.mxu0 %v440
    %1003 = vmatprep.subr.mxu0 0.0
    %1004 = vmatpush2.msra.mxu0 0.0
    %1005 = vmatprep.subr.mxu0 0.0
    %1006 = vmatpush2.msra.mxu0 0.0
    %1007 = vmatprep.subr.mxu0 0.0
    %1008 = vmatpush2.msra.mxu0 0.0
    %1009 = vmatprep.subr.mxu0 0.0
    %1010 = vmatpush2.msra.mxu0 0.0
    %1011 = vmatprep.subr.mxu0 0.0
    %1012 = vmatpush2.msra.mxu0 0.0
    %1013 = vmatprep.subr.mxu0 0.0
    %1014 = vmatpush2.msra.mxu0 0.0
    %1015 = vmatprep.subr.mxu0 0.0
    %1016 = vmatpush2.msra.mxu0 0.0
    %1017 = vmatprep.subr.mxu0 0.0
    %1018 = vmatpush2.msra.mxu0 0.0
    %1019 = vmatprep.subr.mxu0 0.0
    %1020 = vmatpush2.msra.mxu0 0.0
    %1021 = vmatprep.subr.mxu0 0.0
    %1022 = vmatpush2.msra.mxu0 0.0
    %1023 = vmatprep.subr.mxu0 0.0
    %1024 = vmatpush2.msra.mxu0 0.0
    %1025 = vmatprep.subr.mxu0 0.0
    %1026 = vmatpush2.msra.mxu0 0.0
    %1027 = vmatprep.subr.mxu0 0.0
    %1028 = vmatpush2.msra.mxu0 0.0
    %1029 = vmatprep.subr.mxu0 0.0
    %1030 = vmatpush2.msra.mxu0 0.0
    %1031 = vmatprep.subr.mxu0 0.0
    %1032 = vmatpush2.msra.mxu0 0.0
    %1033 = vmatprep.subr.mxu0 0.0
    %1034 = vmatpush2.msra.mxu0 0.0
    %1035 = vmatprep.mubr.f32.mxu0 0.0
    %1036 = vmatmul.mubr.f32.gmra.mxu0 %v891
    %v1037 = vpop.f32.mrf.mxu0
    %v1038 = vadd.f32 0.0, %v1037
    %v1039 = vpop.f32.mrf.mxu0
    %v1040 = vadd.f32 0.0, %v1039
    %1041 = vdwg.mxu0
    %v1042 = vadd.f32 %v896, %v967
    %v1043 = vadd.f32 %v897, %v969
    %v1044 = vadd.f32 %v898, %v1038
    %v1045 = vadd.f32 %v899, %v1040
    %v1046 = vadd.f32 %v1042, %v665
    %v1047 = vadd.f32 %v1043, %v669
    %v1048 = vadd.f32 %v1044, %v673
    %v1049 = vadd.f32 %v1045, %v677
    %v1050 = vxor.u32 %v1046, 2147483648
    %v1051 = vxor.u32 %v1047, 2147483648
    %v1052 = vxor.u32 %v1048, 2147483648
    %v1053 = vmul.f32 %v1050, 1.442695
    %v1054 = vpow.pop %v1053
    %v1055 = vmul.f32 %v1051, 1.442695
    %v1056 = vpow.pop %v1055
    %v1057 = vmul.f32 %v1052, 1.442695
    %v1058 = vpow.pop %v1057
    %v1059 = vadd.f32 %v1054, 1.0
    %v1060 = vadd.f32 %v1056, 1.0
    %v1061 = vadd.f32 %v1058, 1.0
    %v1062 = vrcp.pop %v1059
    %v1063 = vmul.f32 1.0, %v1062
    %v1064 = vrcp.pop %v1060
    %v1065 = vmul.f32 1.0, %v1064
    %v1066 = vrcp.pop %v1061
    %v1067 = vmul.f32 1.0, %v1066
    %v1068 = vtanh.pop %v1049
    %v1069 = vmul.f32 %v1065, %v889
    %v1070 = vmul.f32 %v1063, %v1068
    %v1071 = vadd.f32 %v1069, %v1070
    %v1072 = vtanh.pop %v1071
    %v1073 = vmul.f32 %v1067, %v1072
    %v1074 = vadd.f32 %v892, %v1073
    %s1075 = smul.u32 3, 4
    %s1076 = smul.addr %s1075, 8
    %s1077 = scalar_lea.vmem [#allocation2], %s1076
    %v1078 = vld [vmem:[%s1077] sm:$0xff]
    %v1079 = vld [vmem:[%s1077 + $0x8] sm:$0xff]
    %v1080 = vld [vmem:[%s1077 + $0x10] sm:$0xff]
    %v1081 = vld [vmem:[%s1077 + $0x18] sm:$0xff]
    %1082 = vmatprep.subr.mxu0 %v499
    %1083 = vmatpush1.msra.mxu0 %v498
    %1084 = vmatprep.subr.mxu0 %v495
    %1085 = vmatpush1.msra.mxu0 %v494
    %1086 = vmatprep.subr.mxu0 %v491
    %1087 = vmatpush1.msra.mxu0 %v490
    %1088 = vmatprep.subr.mxu0 %v487
    %1089 = vmatpush1.msra.mxu0 %v486
    %1090 = vmatprep.subr.mxu0 %v483
    %1091 = vmatpush1.msra.mxu0 %v482
    %1092 = vmatprep.subr.mxu0 %v479
    %1093 = vmatpush1.msra.mxu0 %v478
    %1094 = vmatprep.subr.mxu0 %v475
    %1095 = vmatpush1.msra.mxu0 %v474
    %1096 = vmatprep.subr.mxu0 %v471
    %1097 = vmatpush1.msra.mxu0 %v470
    %1098 = vmatprep.subr.mxu0 %v467
    %1099 = vmatpush1.msra.mxu0 %v466
    %1100 = vmatprep.subr.mxu0 %v463
    %1101 = vmatpush1.msra.mxu0 %v462
    %1102 = vmatprep.subr.mxu0 %v459
    %1103 = vmatpush1.msra.mxu0 %v458
    %1104 = vmatprep.subr.mxu0 %v455
    %1105 = vmatpush1.msra.mxu0 %v454
    %1106 = vmatprep.subr.mxu0 %v451
    %1107 = vmatpush1.msra.mxu0 %v450
    %1108 = vmatprep.subr.mxu0 %v447
    %1109 = vmatpush1.msra.mxu0 %v446
    %1110 = vmatprep.subr.mxu0 %v443
    %1111 = vmatpush1.msra.mxu0 %v442
    %1112 = vmatprep.subr.mxu0 %v439
    %1113 = vmatpush1.msra.mxu0 %v438
    %1114 = vmatprep.subr.mxu0 0.0
    %1115 = vmatpush2.msra.mxu0 0.0
    %1116 = vmatprep.subr.mxu0 0.0
    %1117 = vmatpush2.msra.mxu0 0.0
    %1118 = vmatprep.subr.mxu0 0.0
    %1119 = vmatpush2.msra.mxu0 0.0
    %1120 = vmatprep.subr.mxu0 0.0
    %1121 = vmatpush2.msra.mxu0 0.0
    %1122 = vmatprep.subr.mxu0 0.0
    %1123 = vmatpush2.msra.mxu0 0.0
    %1124 = vmatprep.subr.mxu0 0.0
    %1125 = vmatpush2.msra.mxu0 0.0
    %1126 = vmatprep.subr.mxu0 0.0
    %1127 = vmatpush2.msra.mxu0 0.0
    %1128 = vmatprep.subr.mxu0 0.0
    %1129 = vmatpush2.msra.mxu0 0.0
    %1130 = vmatprep.subr.mxu0 0.0
    %1131 = vmatpush2.msra.mxu0 0.0
    %1132 = vmatprep.subr.mxu0 0.0
    %1133 = vmatpush2.msra.mxu0 0.0
    %1134 = vmatprep.subr.mxu0 0.0
    %1135 = vmatpush2.msra.mxu0 0.0
    %1136 = vmatprep.subr.mxu0 0.0
    %1137 = vmatpush2.msra.mxu0 0.0
    %1138 = vmatprep.subr.mxu0 0.0
    %1139 = vmatpush2.msra.mxu0 0.0
    %1140 = vmatprep.subr.mxu0 0.0
    %1141 = vmatpush2.msra.mxu0 0.0
    %1142 = vmatprep.subr.mxu0 0.0
    %1143 = vmatpush2.msra.mxu0 0.0
    %1144 = vmatprep.subr.mxu0 0.0
    %1145 = vmatpush2.msra.mxu0 0.0
    %1146 = vmatprep.mubr.f32.mxu0 0.0
    %1147 = vmatmul.mubr.f32.gmra.mxu0 %v1073
    %v1148 = vpop.f32.mrf.mxu0
    %v1149 = vadd.f32 0.0, %v1148
    %v1150 = vpop.f32.mrf.mxu0
    %v1151 = vadd.f32 0.0, %v1150
    %1152 = vdwg.mxu0
    %1153 = vmatprep.subr.mxu0 %v501
    %1154 = vmatpush1.msra.mxu0 %v500
    %1155 = vmatprep.subr.mxu0 %v497
    %1156 = vmatpush1.msra.mxu0 %v496
    %1157 = vmatprep.subr.mxu0 %v493
    %1158 = vmatpush1.msra.mxu0 %v492
    %1159 = vmatprep.subr.mxu0 %v489
    %1160 = vmatpush1.msra.mxu0 %v488
    %1161 = vmatprep.subr.mxu0 %v485
    %1162 = vmatpush1.msra.mxu0 %v484
    %1163 = vmatprep.subr.mxu0 %v481
    %1164 = vmatpush1.msra.mxu0 %v480
    %1165 = vmatprep.subr.mxu0 %v477
    %1166 = vmatpush1.msra.mxu0 %v476
    %1167 = vmatprep.subr.mxu0 %v473
    %1168 = vmatpush1.msra.mxu0 %v472
    %1169 = vmatprep.subr.mxu0 %v469
    %1170 = vmatpush1.msra.mxu0 %v468
    %1171 = vmatprep.subr.mxu0 %v465
    %1172 = vmatpush1.msra.mxu0 %v464
    %1173 = vmatprep.subr.mxu0 %v461
    %1174 = vmatpush1.msra.mxu0 %v460
    %1175 = vmatprep.subr.mxu0 %v457
    %1176 = vmatpush1.msra.mxu0 %v456
    %1177 = vmatprep.subr.mxu0 %v453
    %1178 = vmatpush1.msra.mxu0 %v452
    %1179 = vmatprep.subr.mxu0 %v449
    %1180 = vmatpush1.msra.mxu0 %v448
    %1181 = vmatprep.subr.mxu0 %v445
    %1182 = vmatpush1.msra.mxu0 %v444
    %1183 = vmatprep.subr.mxu0 %v441
    %1184 = vmatpush1.msra.mxu0 %v440
    %1185 = vmatprep.subr.mxu0 0.0
    %1186 = vmatpush2.msra.mxu0 0.0
    %1187 = vmatprep.subr.mxu0 0.0
    %1188 = vmatpush2.msra.mxu0 0.0
    %1189 = vmatprep.subr.mxu0 0.0
    %1190 = vmatpush2.msra.mxu0 0.0
    %1191 = vmatprep.subr.mxu0 0.0
    %1192 = vmatpush2.msra.mxu0 0.0
    %1193 = vmatprep.subr.mxu0 0.0
    %1194 = vmatpush2.msra.mxu0 0.0
    %1195 = vmatprep.subr.mxu0 0.0
    %1196 = vmatpush2.msra.mxu0 0.0
    %1197 = vmatprep.subr.mxu0 0.0
    %1198 = vmatpush2.msra.mxu0 0.0
    %1199 = vmatprep.subr.mxu0 0.0
    %1200 = vmatpush2.msra.mxu0 0.0
    %1201 = vmatprep.subr.mxu0 0.0
    %1202 = vmatpush2.msra.mxu0 0.0
    %1203 = vmatprep.subr.mxu0 0.0
    %1204 = vmatpush2.msra.mxu0 0.0
    %1205 = vmatprep.subr.mxu0 0.0
    %1206 = vmatpush2.msra.mxu0 0.0
    %1207 = vmatprep.subr.mxu0 0.0
    %1208 = vmatpush2.msra.mxu0 0.0
    %1209 = vmatprep.subr.mxu0 0.0
    %1210 = vmatpush2.msra.mxu0 0.0
    %1211 = vmatprep.subr.mxu0 0.0
    %1212 = vmatpush2.msra.mxu0 0.0
    %1213 = vmatprep.subr.mxu0 0.0
    %1214 = vmatpush2.msra.mxu0 0.0
    %1215 = vmatprep.subr.mxu0 0.0
    %1216 = vmatpush2.msra.mxu0 0.0
    %1217 = vmatprep.mubr.f32.mxu0 0.0
    %1218 = vmatmul.mubr.f32.gmra.mxu0 %v1073
    %v1219 = vpop.f32.mrf.mxu0
    %v1220 = vadd.f32 0.0, %v1219
    %v1221 = vpop.f32.mrf.mxu0
    %v1222 = vadd.f32 0.0, %v1221
    %1223 = vdwg.mxu0
    %v1224 = vadd.f32 %v1078, %v1149
    %v1225 = vadd.f32 %v1079, %v1151
    %v1226 = vadd.f32 %v1080, %v1220
    %v1227 = vadd.f32 %v1081, %v1222
    %v1228 = vadd.f32 %v1224, %v665
    %v1229 = vadd.f32 %v1225, %v669
    %v1230 = vadd.f32 %v1226, %v673
    %v1231 = vadd.f32 %v1227, %v677
    %v1232 = vxor.u32 %v1228, 2147483648
    %v1233 = vxor.u32 %v1229, 2147483648
    %v1234 = vxor.u32 %v1230, 2147483648
    %v1235 = vmul.f32 %v1232, 1.442695
    %v1236 = vpow.pop %v1235
    %v1237 = vmul.f32 %v1233, 1.442695
    %v1238 = vpow.pop %v1237
    %v1239 = vmul.f32 %v1234, 1.442695
    %v1240 = vpow.pop %v1239
    %v1241 = vadd.f32 %v1236, 1.0
    %v1242 = vadd.f32 %v1238, 1.0
    %v1243 = vadd.f32 %v1240, 1.0
    %v1244 = vrcp.pop %v1241
    %v1245 = vmul.f32 1.0, %v1244
    %v1246 = vrcp.pop %v1242
    %v1247 = vmul.f32 1.0, %v1246
    %v1248 = vrcp.pop %v1243
    %v1249 = vmul.f32 1.0, %v1248
    %v1250 = vtanh.pop %v1231
    %v1251 = vmul.f32 %v1247, %v1071
    %v1252 = vmul.f32 %v1245, %v1250
    %v1253 = vadd.f32 %v1251, %v1252
    %v1254 = vtanh.pop %v1253
    %v1255 = vmul.f32 %v1249, %v1254
    %v1256 = vadd.f32 %v1074, %v1255
    %s1257 = smul.u32 4, 4
    %s1258 = smul.addr %s1257, 8
    %s1259 = scalar_lea.vmem [#allocation2], %s1258
    %v1260 = vld [vmem:[%s1259] sm:$0xff]
    %v1261 = vld [vmem:[%s1259 + $0x8] sm:$0xff]
    %v1262 = vld [vmem:[%s1259 + $0x10] sm:$0xff]
    %v1263 = vld [vmem:[%s1259 + $0x18] sm:$0xff]
    %1264 = vmatprep.subr.mxu0 %v499
    %1265 = vmatpush1.msra.mxu0 %v498
    %1266 = vmatprep.subr.mxu0 %v495
    %1267 = vmatpush1.msra.mxu0 %v494
    %1268 = vmatprep.subr.mxu0 %v491
    %1269 = vmatpush1.msra.mxu0 %v490
    %1270 = vmatprep.subr.mxu0 %v487
    %1271 = vmatpush1.msra.mxu0 %v486
    %1272 = vmatprep.subr.mxu0 %v483
    %1273 = vmatpush1.msra.mxu0 %v482
    %1274 = vmatprep.subr.mxu0 %v479
    %1275 = vmatpush1.msra.mxu0 %v478
    %1276 = vmatprep.subr.mxu0 %v475
    %1277 = vmatpush1.msra.mxu0 %v474
    %1278 = vmatprep.subr.mxu0 %v471
    %1279 = vmatpush1.msra.mxu0 %v470
    %1280 = vmatprep.subr.mxu0 %v467
    %1281 = vmatpush1.msra.mxu0 %v466
    %1282 = vmatprep.subr.mxu0 %v463
    %1283 = vmatpush1.msra.mxu0 %v462
    %1284 = vmatprep.subr.mxu0 %v459
    %1285 = vmatpush1.msra.mxu0 %v458
    %1286 = vmatprep.subr.mxu0 %v455
    %1287 = vmatpush1.msra.mxu0 %v454
    %1288 = vmatprep.subr.mxu0 %v451
    %1289 = vmatpush1.msra.mxu0 %v450
    %1290 = vmatprep.subr.mxu0 %v447
    %1291 = vmatpush1.msra.mxu0 %v446
    %1292 = vmatprep.subr.mxu0 %v443
    %1293 = vmatpush1.msra.mxu0 %v442
    %1294 = vmatprep.subr.mxu0 %v439
    %1295 = vmatpush1.msra.mxu0 %v438
    %1296 = vmatprep.subr.mxu0 0.0
    %1297 = vmatpush2.msra.mxu0 0.0
    %1298 = vmatprep.subr.mxu0 0.0
    %1299 = vmatpush2.msra.mxu0 0.0
    %1300 = vmatprep.subr.mxu0 0.0
    %1301 = vmatpush2.msra.mxu0 0.0
    %1302 = vmatprep.subr.mxu0 0.0
    %1303 = vmatpush2.msra.mxu0 0.0
    %1304 = vmatprep.subr.mxu0 0.0
    %1305 = vmatpush2.msra.mxu0 0.0
    %1306 = vmatprep.subr.mxu0 0.0
    %1307 = vmatpush2.msra.mxu0 0.0
    %1308 = vmatprep.subr.mxu0 0.0
    %1309 = vmatpush2.msra.mxu0 0.0
    %1310 = vmatprep.subr.mxu0 0.0
    %1311 = vmatpush2.msra.mxu0 0.0
    %1312 = vmatprep.subr.mxu0 0.0
    %1313 = vmatpush2.msra.mxu0 0.0
    %1314 = vmatprep.subr.mxu0 0.0
    %1315 = vmatpush2.msra.mxu0 0.0
    %1316 = vmatprep.subr.mxu0 0.0
    %1317 = vmatpush2.msra.mxu0 0.0
    %1318 = vmatprep.subr.mxu0 0.0
    %1319 = vmatpush2.msra.mxu0 0.0
    %1320 = vmatprep.subr.mxu0 0.0
    %1321 = vmatpush2.msra.mxu0 0.0
    %1322 = vmatprep.subr.mxu0 0.0
    %1323 = vmatpush2.msra.mxu0 0.0
    %1324 = vmatprep.subr.mxu0 0.0
    %1325 = vmatpush2.msra.mxu0 0.0
    %1326 = vmatprep.subr.mxu0 0.0
    %1327 = vmatpush2.msra.mxu0 0.0
    %1328 = vmatprep.mubr.f32.mxu0 0.0
    %1329 = vmatmul.mubr.f32.gmra.mxu0 %v1255
    %v1330 = vpop.f32.mrf.mxu0
    %v1331 = vadd.f32 0.0, %v1330
    %v1332 = vpop.f32.mrf.mxu0
    %v1333 = vadd.f32 0.0, %v1332
    %1334 = vdwg.mxu0
    %1335 = vmatprep.subr.mxu0 %v501
    %1336 = vmatpush1.msra.mxu0 %v500
    %1337 = vmatprep.subr.mxu0 %v497
    %1338 = vmatpush1.msra.mxu0 %v496
    %1339 = vmatprep.subr.mxu0 %v493
    %1340 = vmatpush1.msra.mxu0 %v492
    %1341 = vmatprep.subr.mxu0 %v489
    %1342 = vmatpush1.msra.mxu0 %v488
    %1343 = vmatprep.subr.mxu0 %v485
    %1344 = vmatpush1.msra.mxu0 %v484
    %1345 = vmatprep.subr.mxu0 %v481
    %1346 = vmatpush1.msra.mxu0 %v480
    %1347 = vmatprep.subr.mxu0 %v477
    %1348 = vmatpush1.msra.mxu0 %v476
    %1349 = vmatprep.subr.mxu0 %v473
    %1350 = vmatpush1.msra.mxu0 %v472
    %1351 = vmatprep.subr.mxu0 %v469
    %1352 = vmatpush1.msra.mxu0 %v468
    %1353 = vmatprep.subr.mxu0 %v465
    %1354 = vmatpush1.msra.mxu0 %v464
    %1355 = vmatprep.subr.mxu0 %v461
    %1356 = vmatpush1.msra.mxu0 %v460
    %1357 = vmatprep.subr.mxu0 %v457
    %1358 = vmatpush1.msra.mxu0 %v456
    %1359 = vmatprep.subr.mxu0 %v453
    %1360 = vmatpush1.msra.mxu0 %v452
    %1361 = vmatprep.subr.mxu0 %v449
    %1362 = vmatpush1.msra.mxu0 %v448
    %1363 = vmatprep.subr.mxu0 %v445
    %1364 = vmatpush1.msra.mxu0 %v444
    %1365 = vmatprep.subr.mxu0 %v441
    %1366 = vmatpush1.msra.mxu0 %v440
    %1367 = vmatprep.subr.mxu0 0.0
    %1368 = vmatpush2.msra.mxu0 0.0
    %1369 = vmatprep.subr.mxu0 0.0
    %1370 = vmatpush2.msra.mxu0 0.0
    %1371 = vmatprep.subr.mxu0 0.0
    %1372 = vmatpush2.msra.mxu0 0.0
    %1373 = vmatprep.subr.mxu0 0.0
    %1374 = vmatpush2.msra.mxu0 0.0
    %1375 = vmatprep.subr.mxu0 0.0
    %1376 = vmatpush2.msra.mxu0 0.0
    %1377 = vmatprep.subr.mxu0 0.0
    %1378 = vmatpush2.msra.mxu0 0.0
    %1379 = vmatprep.subr.mxu0 0.0
    %1380 = vmatpush2.msra.mxu0 0.0
    %1381 = vmatprep.subr.mxu0 0.0
    %1382 = vmatpush2.msra.mxu0 0.0
    %1383 = vmatprep.subr.mxu0 0.0
    %1384 = vmatpush2.msra.mxu0 0.0
    %1385 = vmatprep.subr.mxu0 0.0
    %1386 = vmatpush2.msra.mxu0 0.0
    %1387 = vmatprep.subr.mxu0 0.0
    %1388 = vmatpush2.msra.mxu0 0.0
    %1389 = vmatprep.subr.mxu0 0.0
    %1390 = vmatpush2.msra.mxu0 0.0
    %1391 = vmatprep.subr.mxu0 0.0
    %1392 = vmatpush2.msra.mxu0 0.0
    %1393 = vmatprep.subr.mxu0 0.0
    %1394 = vmatpush2.msra.mxu0 0.0
    %1395 = vmatprep.subr.mxu0 0.0
    %1396 = vmatpush2.msra.mxu0 0.0
    %1397 = vmatprep.subr.mxu0 0.0
    %1398 = vmatpush2.msra.mxu0 0.0
    %1399 = vmatprep.mubr.f32.mxu0 0.0
    %1400 = vmatmul.mubr.f32.gmra.mxu0 %v1255
    %v1401 = vpop.f32.mrf.mxu0
    %v1402 = vadd.f32 0.0, %v1401
    %v1403 = vpop.f32.mrf.mxu0
    %v1404 = vadd.f32 0.0, %v1403
    %1405 = vdwg.mxu0
    %v1406 = vadd.f32 %v1260, %v1331
    %v1407 = vadd.f32 %v1261, %v1333
    %v1408 = vadd.f32 %v1262, %v1402
    %v1409 = vadd.f32 %v1263, %v1404
    %v1410 = vadd.f32 %v1406, %v665
    %v1411 = vadd.f32 %v1407, %v669
    %v1412 = vadd.f32 %v1408, %v673
    %v1413 = vadd.f32 %v1409, %v677
    %v1414 = vxor.u32 %v1410, 2147483648
    %v1415 = vxor.u32 %v1411, 2147483648
    %v1416 = vxor.u32 %v1412, 2147483648
    %v1417 = vmul.f32 %v1414, 1.442695
    %v1418 = vpow.pop %v1417
    %v1419 = vmul.f32 %v1415, 1.442695
    %v1420 = vpow.pop %v1419
    %v1421 = vmul.f32 %v1416, 1.442695
    %v1422 = vpow.pop %v1421
    %v1423 = vadd.f32 %v1418, 1.0
    %v1424 = vadd.f32 %v1420, 1.0
    %v1425 = vadd.f32 %v1422, 1.0
    %v1426 = vrcp.pop %v1423
    %v1427 = vmul.f32 1.0, %v1426
    %v1428 = vrcp.pop %v1424
    %v1429 = vmul.f32 1.0, %v1428
    %v1430 = vrcp.pop %v1425
    %v1431 = vmul.f32 1.0, %v1430
    %v1432 = vtanh.pop %v1413
    %v1433 = vmul.f32 %v1429, %v1253
    %v1434 = vmul.f32 %v1427, %v1432
    %v1435 = vadd.f32 %v1433, %v1434
    %v1436 = vtanh.pop %v1435
    %v1437 = vmul.f32 %v1431, %v1436
    %v1438 = vadd.f32 %v1256, %v1437
    %s1439 = smul.u32 5, 4
    %s1440 = smul.addr %s1439, 8
    %s1441 = scalar_lea.vmem [#allocation2], %s1440
    %v1442 = vld [vmem:[%s1441] sm:$0xff]
    %v1443 = vld [vmem:[%s1441 + $0x8] sm:$0xff]
    %v1444 = vld [vmem:[%s1441 + $0x10] sm:$0xff]
    %v1445 = vld [vmem:[%s1441 + $0x18] sm:$0xff]
    %1446 = vmatprep.subr.mxu0 %v499
    %1447 = vmatpush1.msra.mxu0 %v498
    %1448 = vmatprep.subr.mxu0 %v495
    %1449 = vmatpush1.msra.mxu0 %v494
    %1450 = vmatprep.subr.mxu0 %v491
    %1451 = vmatpush1.msra.mxu0 %v490
    %1452 = vmatprep.subr.mxu0 %v487
    %1453 = vmatpush1.msra.mxu0 %v486
    %1454 = vmatprep.subr.mxu0 %v483
    %1455 = vmatpush1.msra.mxu0 %v482
    %1456 = vmatprep.subr.mxu0 %v479
    %1457 = vmatpush1.msra.mxu0 %v478
    %1458 = vmatprep.subr.mxu0 %v475
    %1459 = vmatpush1.msra.mxu0 %v474
    %1460 = vmatprep.subr.mxu0 %v471
    %1461 = vmatpush1.msra.mxu0 %v470
    %1462 = vmatprep.subr.mxu0 %v467
    %1463 = vmatpush1.msra.mxu0 %v466
    %1464 = vmatprep.subr.mxu0 %v463
    %1465 = vmatpush1.msra.mxu0 %v462
    %1466 = vmatprep.subr.mxu0 %v459
    %1467 = vmatpush1.msra.mxu0 %v458
    %1468 = vmatprep.subr.mxu0 %v455
    %1469 = vmatpush1.msra.mxu0 %v454
    %1470 = vmatprep.subr.mxu0 %v451
    %1471 = vmatpush1.msra.mxu0 %v450
    %1472 = vmatprep.subr.mxu0 %v447
    %1473 = vmatpush1.msra.mxu0 %v446
    %1474 = vmatprep.subr.mxu0 %v443
    %1475 = vmatpush1.msra.mxu0 %v442
    %1476 = vmatprep.subr.mxu0 %v439
    %1477 = vmatpush1.msra.mxu0 %v438
    %1478 = vmatprep.subr.mxu0 0.0
    %1479 = vmatpush2.msra.mxu0 0.0
    %1480 = vmatprep.subr.mxu0 0.0
    %1481 = vmatpush2.msra.mxu0 0.0
    %1482 = vmatprep.subr.mxu0 0.0
    %1483 = vmatpush2.msra.mxu0 0.0
    %1484 = vmatprep.subr.mxu0 0.0
    %1485 = vmatpush2.msra.mxu0 0.0
    %1486 = vmatprep.subr.mxu0 0.0
    %1487 = vmatpush2.msra.mxu0 0.0
    %1488 = vmatprep.subr.mxu0 0.0
    %1489 = vmatpush2.msra.mxu0 0.0
    %1490 = vmatprep.subr.mxu0 0.0
    %1491 = vmatpush2.msra.mxu0 0.0
    %1492 = vmatprep.subr.mxu0 0.0
    %1493 = vmatpush2.msra.mxu0 0.0
    %1494 = vmatprep.subr.mxu0 0.0
    %1495 = vmatpush2.msra.mxu0 0.0
    %1496 = vmatprep.subr.mxu0 0.0
    %1497 = vmatpush2.msra.mxu0 0.0
    %1498 = vmatprep.subr.mxu0 0.0
    %1499 = vmatpush2.msra.mxu0 0.0
    %1500 = vmatprep.subr.mxu0 0.0
    %1501 = vmatpush2.msra.mxu0 0.0
    %1502 = vmatprep.subr.mxu0 0.0
    %1503 = vmatpush2.msra.mxu0 0.0
    %1504 = vmatprep.subr.mxu0 0.0
    %1505 = vmatpush2.msra.mxu0 0.0
    %1506 = vmatprep.subr.mxu0 0.0
    %1507 = vmatpush2.msra.mxu0 0.0
    %1508 = vmatprep.subr.mxu0 0.0
    %1509 = vmatpush2.msra.mxu0 0.0
    %1510 = vmatprep.mubr.f32.mxu0 0.0
    %1511 = vmatmul.mubr.f32.gmra.mxu0 %v1437
    %v1512 = vpop.f32.mrf.mxu0
    %v1513 = vadd.f32 0.0, %v1512
    %v1514 = vpop.f32.mrf.mxu0
    %v1515 = vadd.f32 0.0, %v1514
    %1516 = vdwg.mxu0
    %1517 = vmatprep.subr.mxu0 %v501
    %1518 = vmatpush1.msra.mxu0 %v500
    %1519 = vmatprep.subr.mxu0 %v497
    %1520 = vmatpush1.msra.mxu0 %v496
    %1521 = vmatprep.subr.mxu0 %v493
    %1522 = vmatpush1.msra.mxu0 %v492
    %1523 = vmatprep.subr.mxu0 %v489
    %1524 = vmatpush1.msra.mxu0 %v488
    %1525 = vmatprep.subr.mxu0 %v485
    %1526 = vmatpush1.msra.mxu0 %v484
    %1527 = vmatprep.subr.mxu0 %v481
    %1528 = vmatpush1.msra.mxu0 %v480
    %1529 = vmatprep.subr.mxu0 %v477
    %1530 = vmatpush1.msra.mxu0 %v476
    %1531 = vmatprep.subr.mxu0 %v473
    %1532 = vmatpush1.msra.mxu0 %v472
    %1533 = vmatprep.subr.mxu0 %v469
    %1534 = vmatpush1.msra.mxu0 %v468
    %1535 = vmatprep.subr.mxu0 %v465
    %1536 = vmatpush1.msra.mxu0 %v464
    %1537 = vmatprep.subr.mxu0 %v461
    %1538 = vmatpush1.msra.mxu0 %v460
    %1539 = vmatprep.subr.mxu0 %v457
    %1540 = vmatpush1.msra.mxu0 %v456
    %1541 = vmatprep.subr.mxu0 %v453
    %1542 = vmatpush1.msra.mxu0 %v452
    %1543 = vmatprep.subr.mxu0 %v449
    %1544 = vmatpush1.msra.mxu0 %v448
    %1545 = vmatprep.subr.mxu0 %v445
    %1546 = vmatpush1.msra.mxu0 %v444
    %1547 = vmatprep.subr.mxu0 %v441
    %1548 = vmatpush1.msra.mxu0 %v440
    %1549 = vmatprep.subr.mxu0 0.0
    %1550 = vmatpush2.msra.mxu0 0.0
    %1551 = vmatprep.subr.mxu0 0.0
    %1552 = vmatpush2.msra.mxu0 0.0
    %1553 = vmatprep.subr.mxu0 0.0
    %1554 = vmatpush2.msra.mxu0 0.0
    %1555 = vmatprep.subr.mxu0 0.0
    %1556 = vmatpush2.msra.mxu0 0.0
    %1557 = vmatprep.subr.mxu0 0.0
    %1558 = vmatpush2.msra.mxu0 0.0
    %1559 = vmatprep.subr.mxu0 0.0
    %1560 = vmatpush2.msra.mxu0 0.0
    %1561 = vmatprep.subr.mxu0 0.0
    %1562 = vmatpush2.msra.mxu0 0.0
    %1563 = vmatprep.subr.mxu0 0.0
    %1564 = vmatpush2.msra.mxu0 0.0
    %1565 = vmatprep.subr.mxu0 0.0
    %1566 = vmatpush2.msra.mxu0 0.0
    %1567 = vmatprep.subr.mxu0 0.0
    %1568 = vmatpush2.msra.mxu0 0.0
    %1569 = vmatprep.subr.mxu0 0.0
    %1570 = vmatpush2.msra.mxu0 0.0
    %1571 = vmatprep.subr.mxu0 0.0
    %1572 = vmatpush2.msra.mxu0 0.0
    %1573 = vmatprep.subr.mxu0 0.0
    %1574 = vmatpush2.msra.mxu0 0.0
    %1575 = vmatprep.subr.mxu0 0.0
    %1576 = vmatpush2.msra.mxu0 0.0
    %1577 = vmatprep.subr.mxu0 0.0
    %1578 = vmatpush2.msra.mxu0 0.0
    %1579 = vmatprep.subr.mxu0 0.0
    %1580 = vmatpush2.msra.mxu0 0.0
    %1581 = vmatprep.mubr.f32.mxu0 0.0
    %1582 = vmatmul.mubr.f32.gmra.mxu0 %v1437
    %v1583 = vpop.f32.mrf.mxu0
    %v1584 = vadd.f32 0.0, %v1583
    %v1585 = vpop.f32.mrf.mxu0
    %v1586 = vadd.f32 0.0, %v1585
    %1587 = vdwg.mxu0
    %v1588 = vadd.f32 %v1442, %v1513
    %v1589 = vadd.f32 %v1443, %v1515
    %v1590 = vadd.f32 %v1444, %v1584
    %v1591 = vadd.f32 %v1445, %v1586
    %v1592 = vadd.f32 %v1588, %v665
    %v1593 = vadd.f32 %v1589, %v669
    %v1594 = vadd.f32 %v1590, %v673
    %v1595 = vadd.f32 %v1591, %v677
    %v1596 = vxor.u32 %v1592, 2147483648
    %v1597 = vxor.u32 %v1593, 2147483648
    %v1598 = vxor.u32 %v1594, 2147483648
    %v1599 = vmul.f32 %v1596, 1.442695
    %v1600 = vpow.pop %v1599
    %v1601 = vmul.f32 %v1597, 1.442695
    %v1602 = vpow.pop %v1601
    %v1603 = vmul.f32 %v1598, 1.442695
    %v1604 = vpow.pop %v1603
    %v1605 = vadd.f32 %v1600, 1.0
    %v1606 = vadd.f32 %v1602, 1.0
    %v1607 = vadd.f32 %v1604, 1.0
    %v1608 = vrcp.pop %v1605
    %v1609 = vmul.f32 1.0, %v1608
    %v1610 = vrcp.pop %v1606
    %v1611 = vmul.f32 1.0, %v1610
    %v1612 = vrcp.pop %v1607
    %v1613 = vmul.f32 1.0, %v1612
    %v1614 = vtanh.pop %v1595
    %v1615 = vmul.f32 %v1611, %v1435
    %v1616 = vmul.f32 %v1609, %v1614
    %v1617 = vadd.f32 %v1615, %v1616
    %v1618 = vtanh.pop %v1617
    %v1619 = vmul.f32 %v1613, %v1618
    %v1620 = vadd.f32 %v1438, %v1619
    %s1621 = smul.u32 6, 4
    %s1622 = smul.addr %s1621, 8
    %s1623 = scalar_lea.vmem [#allocation2], %s1622
    %v1624 = vld [vmem:[%s1623] sm:$0xff]
    %v1625 = vld [vmem:[%s1623 + $0x8] sm:$0xff]
    %v1626 = vld [vmem:[%s1623 + $0x10] sm:$0xff]
    %v1627 = vld [vmem:[%s1623 + $0x18] sm:$0xff]
    %1628 = vmatprep.subr.mxu0 %v499
    %1629 = vmatpush1.msra.mxu0 %v498
    %1630 = vmatprep.subr.mxu0 %v495
    %1631 = vmatpush1.msra.mxu0 %v494
    %1632 = vmatprep.subr.mxu0 %v491
    %1633 = vmatpush1.msra.mxu0 %v490
    %1634 = vmatprep.subr.mxu0 %v487
    %1635 = vmatpush1.msra.mxu0 %v486
    %1636 = vmatprep.subr.mxu0 %v483
    %1637 = vmatpush1.msra.mxu0 %v482
    %1638 = vmatprep.subr.mxu0 %v479
    %1639 = vmatpush1.msra.mxu0 %v478
    %1640 = vmatprep.subr.mxu0 %v475
    %1641 = vmatpush1.msra.mxu0 %v474
    %1642 = vmatprep.subr.mxu0 %v471
    %1643 = vmatpush1.msra.mxu0 %v470
    %1644 = vmatprep.subr.mxu0 %v467
    %1645 = vmatpush1.msra.mxu0 %v466
    %1646 = vmatprep.subr.mxu0 %v463
    %1647 = vmatpush1.msra.mxu0 %v462
    %1648 = vmatprep.subr.mxu0 %v459
    %1649 = vmatpush1.msra.mxu0 %v458
    %1650 = vmatprep.subr.mxu0 %v455
    %1651 = vmatpush1.msra.mxu0 %v454
    %1652 = vmatprep.subr.mxu0 %v451
    %1653 = vmatpush1.msra.mxu0 %v450
    %1654 = vmatprep.subr.mxu0 %v447
    %1655 = vmatpush1.msra.mxu0 %v446
    %1656 = vmatprep.subr.mxu0 %v443
    %1657 = vmatpush1.msra.mxu0 %v442
    %1658 = vmatprep.subr.mxu0 %v439
    %1659 = vmatpush1.msra.mxu0 %v438
    %1660 = vmatprep.subr.mxu0 0.0
    %1661 = vmatpush2.msra.mxu0 0.0
    %1662 = vmatprep.subr.mxu0 0.0
    %1663 = vmatpush2.msra.mxu0 0.0
    %1664 = vmatprep.subr.mxu0 0.0
    %1665 = vmatpush2.msra.mxu0 0.0
    %1666 = vmatprep.subr.mxu0 0.0
    %1667 = vmatpush2.msra.mxu0 0.0
    %1668 = vmatprep.subr.mxu0 0.0
    %1669 = vmatpush2.msra.mxu0 0.0
    %1670 = vmatprep.subr.mxu0 0.0
    %1671 = vmatpush2.msra.mxu0 0.0
    %1672 = vmatprep.subr.mxu0 0.0
    %1673 = vmatpush2.msra.mxu0 0.0
    %1674 = vmatprep.subr.mxu0 0.0
    %1675 = vmatpush2.msra.mxu0 0.0
    %1676 = vmatprep.subr.mxu0 0.0
    %1677 = vmatpush2.msra.mxu0 0.0
    %1678 = vmatprep.subr.mxu0 0.0
    %1679 = vmatpush2.msra.mxu0 0.0
    %1680 = vmatprep.subr.mxu0 0.0
    %1681 = vmatpush2.msra.mxu0 0.0
    %1682 = vmatprep.subr.mxu0 0.0
    %1683 = vmatpush2.msra.mxu0 0.0
    %1684 = vmatprep.subr.mxu0 0.0
    %1685 = vmatpush2.msra.mxu0 0.0
    %1686 = vmatprep.subr.mxu0 0.0
    %1687 = vmatpush2.msra.mxu0 0.0
    %1688 = vmatprep.subr.mxu0 0.0
    %1689 = vmatpush2.msra.mxu0 0.0
    %1690 = vmatprep.subr.mxu0 0.0
    %1691 = vmatpush2.msra.mxu0 0.0
    %1692 = vmatprep.mubr.f32.mxu0 0.0
    %1693 = vmatmul.mubr.f32.gmra.mxu0 %v1619
    %v1694 = vpop.f32.mrf.mxu0
    %v1695 = vadd.f32 0.0, %v1694
    %v1696 = vpop.f32.mrf.mxu0
    %v1697 = vadd.f32 0.0, %v1696
    %1698 = vdwg.mxu0
    %1699 = vmatprep.subr.mxu0 %v501
    %1700 = vmatpush1.msra.mxu0 %v500
    %1701 = vmatprep.subr.mxu0 %v497
    %1702 = vmatpush1.msra.mxu0 %v496
    %1703 = vmatprep.subr.mxu0 %v493
    %1704 = vmatpush1.msra.mxu0 %v492
    %1705 = vmatprep.subr.mxu0 %v489
    %1706 = vmatpush1.msra.mxu0 %v488
    %1707 = vmatprep.subr.mxu0 %v485
    %1708 = vmatpush1.msra.mxu0 %v484
    %1709 = vmatprep.subr.mxu0 %v481
    %1710 = vmatpush1.msra.mxu0 %v480
    %1711 = vmatprep.subr.mxu0 %v477
    %1712 = vmatpush1.msra.mxu0 %v476
    %1713 = vmatprep.subr.mxu0 %v473
    %1714 = vmatpush1.msra.mxu0 %v472
    %1715 = vmatprep.subr.mxu0 %v469
    %1716 = vmatpush1.msra.mxu0 %v468
    %1717 = vmatprep.subr.mxu0 %v465
    %1718 = vmatpush1.msra.mxu0 %v464
    %1719 = vmatprep.subr.mxu0 %v461
    %1720 = vmatpush1.msra.mxu0 %v460
    %1721 = vmatprep.subr.mxu0 %v457
    %1722 = vmatpush1.msra.mxu0 %v456
    %1723 = vmatprep.subr.mxu0 %v453
    %1724 = vmatpush1.msra.mxu0 %v452
    %1725 = vmatprep.subr.mxu0 %v449
    %1726 = vmatpush1.msra.mxu0 %v448
    %1727 = vmatprep.subr.mxu0 %v445
    %1728 = vmatpush1.msra.mxu0 %v444
    %1729 = vmatprep.subr.mxu0 %v441
    %1730 = vmatpush1.msra.mxu0 %v440
    %1731 = vmatprep.subr.mxu0 0.0
    %1732 = vmatpush2.msra.mxu0 0.0
    %1733 = vmatprep.subr.mxu0 0.0
    %1734 = vmatpush2.msra.mxu0 0.0
    %1735 = vmatprep.subr.mxu0 0.0
    %1736 = vmatpush2.msra.mxu0 0.0
    %1737 = vmatprep.subr.mxu0 0.0
    %1738 = vmatpush2.msra.mxu0 0.0
    %1739 = vmatprep.subr.mxu0 0.0
    %1740 = vmatpush2.msra.mxu0 0.0
    %1741 = vmatprep.subr.mxu0 0.0
    %1742 = vmatpush2.msra.mxu0 0.0
    %1743 = vmatprep.subr.mxu0 0.0
    %1744 = vmatpush2.msra.mxu0 0.0
    %1745 = vmatprep.subr.mxu0 0.0
    %1746 = vmatpush2.msra.mxu0 0.0
    %1747 = vmatprep.subr.mxu0 0.0
    %1748 = vmatpush2.msra.mxu0 0.0
    %1749 = vmatprep.subr.mxu0 0.0
    %1750 = vmatpush2.msra.mxu0 0.0
    %1751 = vmatprep.subr.mxu0 0.0
    %1752 = vmatpush2.msra.mxu0 0.0
    %1753 = vmatprep.subr.mxu0 0.0
    %1754 = vmatpush2.msra.mxu0 0.0
    %1755 = vmatprep.subr.mxu0 0.0
    %1756 = vmatpush2.msra.mxu0 0.0
    %1757 = vmatprep.subr.mxu0 0.0
    %1758 = vmatpush2.msra.mxu0 0.0
    %1759 = vmatprep.subr.mxu0 0.0
    %1760 = vmatpush2.msra.mxu0 0.0
    %1761 = vmatprep.subr.mxu0 0.0
    %1762 = vmatpush2.msra.mxu0 0.0
    %1763 = vmatprep.mubr.f32.mxu0 0.0
    %1764 = vmatmul.mubr.f32.gmra.mxu0 %v1619
    %v1765 = vpop.f32.mrf.mxu0
    %v1766 = vadd.f32 0.0, %v1765
    %v1767 = vpop.f32.mrf.mxu0
    %v1768 = vadd.f32 0.0, %v1767
    %1769 = vdwg.mxu0
    %v1770 = vadd.f32 %v1624, %v1695
    %v1771 = vadd.f32 %v1625, %v1697
    %v1772 = vadd.f32 %v1626, %v1766
    %v1773 = vadd.f32 %v1627, %v1768
    %v1774 = vadd.f32 %v1770, %v665
    %v1775 = vadd.f32 %v1771, %v669
    %v1776 = vadd.f32 %v1772, %v673
    %v1777 = vadd.f32 %v1773, %v677
    %v1778 = vxor.u32 %v1774, 2147483648
    %v1779 = vxor.u32 %v1775, 2147483648
    %v1780 = vxor.u32 %v1776, 2147483648
    %v1781 = vmul.f32 %v1778, 1.442695
    %v1782 = vpow.pop %v1781
    %v1783 = vmul.f32 %v1779, 1.442695
    %v1784 = vpow.pop %v1783
    %v1785 = vmul.f32 %v1780, 1.442695
    %v1786 = vpow.pop %v1785
    %v1787 = vadd.f32 %v1782, 1.0
    %v1788 = vadd.f32 %v1784, 1.0
    %v1789 = vadd.f32 %v1786, 1.0
    %v1790 = vrcp.pop %v1787
    %v1791 = vmul.f32 1.0, %v1790
    %v1792 = vrcp.pop %v1788
    %v1793 = vmul.f32 1.0, %v1792
    %v1794 = vrcp.pop %v1789
    %v1795 = vmul.f32 1.0, %v1794
    %v1796 = vtanh.pop %v1777
    %v1797 = vmul.f32 %v1793, %v1617
    %v1798 = vmul.f32 %v1791, %v1796
    %v1799 = vadd.f32 %v1797, %v1798
    %v1800 = vtanh.pop %v1799
    %v1801 = vmul.f32 %v1795, %v1800
    %v1802 = vadd.f32 %v1620, %v1801
    %s1803 = smul.u32 7, 4
    %s1804 = smul.addr %s1803, 8
    %s1805 = scalar_lea.vmem [#allocation2], %s1804
    %v1806 = vld [vmem:[%s1805] sm:$0xff]
    %v1807 = vld [vmem:[%s1805 + $0x8] sm:$0xff]
    %v1808 = vld [vmem:[%s1805 + $0x10] sm:$0xff]
    %v1809 = vld [vmem:[%s1805 + $0x18] sm:$0xff]
    %1810 = vmatprep.subr.mxu0 %v499
    %1811 = vmatpush1.msra.mxu0 %v498
    %1812 = vmatprep.subr.mxu0 %v495
    %1813 = vmatpush1.msra.mxu0 %v494
    %1814 = vmatprep.subr.mxu0 %v491
    %1815 = vmatpush1.msra.mxu0 %v490
    %1816 = vmatprep.subr.mxu0 %v487
    %1817 = vmatpush1.msra.mxu0 %v486
    %1818 = vmatprep.subr.mxu0 %v483
    %1819 = vmatpush1.msra.mxu0 %v482
    %1820 = vmatprep.subr.mxu0 %v479
    %1821 = vmatpush1.msra.mxu0 %v478
    %1822 = vmatprep.subr.mxu0 %v475
    %1823 = vmatpush1.msra.mxu0 %v474
    %1824 = vmatprep.subr.mxu0 %v471
    %1825 = vmatpush1.msra.mxu0 %v470
    %1826 = vmatprep.subr.mxu0 %v467
    %1827 = vmatpush1.msra.mxu0 %v466
    %1828 = vmatprep.subr.mxu0 %v463
    %1829 = vmatpush1.msra.mxu0 %v462
    %1830 = vmatprep.subr.mxu0 %v459
    %1831 = vmatpush1.msra.mxu0 %v458
    %1832 = vmatprep.subr.mxu0 %v455
    %1833 = vmatpush1.msra.mxu0 %v454
    %1834 = vmatprep.subr.mxu0 %v451
    %1835 = vmatpush1.msra.mxu0 %v450
    %1836 = vmatprep.subr.mxu0 %v447
    %1837 = vmatpush1.msra.mxu0 %v446
    %1838 = vmatprep.subr.mxu0 %v443
    %1839 = vmatpush1.msra.mxu0 %v442
    %1840 = vmatprep.subr.mxu0 %v439
    %1841 = vmatpush1.msra.mxu0 %v438
    %1842 = vmatprep.subr.mxu0 0.0
    %1843 = vmatpush2.msra.mxu0 0.0
    %1844 = vmatprep.subr.mxu0 0.0
    %1845 = vmatpush2.msra.mxu0 0.0
    %1846 = vmatprep.subr.mxu0 0.0
    %1847 = vmatpush2.msra.mxu0 0.0
    %1848 = vmatprep.subr.mxu0 0.0
    %1849 = vmatpush2.msra.mxu0 0.0
    %1850 = vmatprep.subr.mxu0 0.0
    %1851 = vmatpush2.msra.mxu0 0.0
    %1852 = vmatprep.subr.mxu0 0.0
    %1853 = vmatpush2.msra.mxu0 0.0
    %1854 = vmatprep.subr.mxu0 0.0
    %1855 = vmatpush2.msra.mxu0 0.0
    %1856 = vmatprep.subr.mxu0 0.0
    %1857 = vmatpush2.msra.mxu0 0.0
    %1858 = vmatprep.subr.mxu0 0.0
    %1859 = vmatpush2.msra.mxu0 0.0
    %1860 = vmatprep.subr.mxu0 0.0
    %1861 = vmatpush2.msra.mxu0 0.0
    %1862 = vmatprep.subr.mxu0 0.0
    %1863 = vmatpush2.msra.mxu0 0.0
    %1864 = vmatprep.subr.mxu0 0.0
    %1865 = vmatpush2.msra.mxu0 0.0
    %1866 = vmatprep.subr.mxu0 0.0
    %1867 = vmatpush2.msra.mxu0 0.0
    %1868 = vmatprep.subr.mxu0 0.0
    %1869 = vmatpush2.msra.mxu0 0.0
    %1870 = vmatprep.subr.mxu0 0.0
    %1871 = vmatpush2.msra.mxu0 0.0
    %1872 = vmatprep.subr.mxu0 0.0
    %1873 = vmatpush2.msra.mxu0 0.0
    %1874 = vmatprep.mubr.f32.mxu0 0.0
    %1875 = vmatmul.mubr.f32.gmra.mxu0 %v1801
    %v1876 = vpop.f32.mrf.mxu0
    %v1877 = vadd.f32 0.0, %v1876
    %v1878 = vpop.f32.mrf.mxu0
    %v1879 = vadd.f32 0.0, %v1878
    %1880 = vdwg.mxu0
    %1881 = vmatprep.subr.mxu0 %v501
    %1882 = vmatpush1.msra.mxu0 %v500
    %1883 = vmatprep.subr.mxu0 %v497
    %1884 = vmatpush1.msra.mxu0 %v496
    %1885 = vmatprep.subr.mxu0 %v493
    %1886 = vmatpush1.msra.mxu0 %v492
    %1887 = vmatprep.subr.mxu0 %v489
    %1888 = vmatpush1.msra.mxu0 %v488
    %1889 = vmatprep.subr.mxu0 %v485
    %1890 = vmatpush1.msra.mxu0 %v484
    %1891 = vmatprep.subr.mxu0 %v481
    %1892 = vmatpush1.msra.mxu0 %v480
    %1893 = vmatprep.subr.mxu0 %v477
    %1894 = vmatpush1.msra.mxu0 %v476
    %1895 = vmatprep.subr.mxu0 %v473
    %1896 = vmatpush1.msra.mxu0 %v472
    %1897 = vmatprep.subr.mxu0 %v469
    %1898 = vmatpush1.msra.mxu0 %v468
    %1899 = vmatprep.subr.mxu0 %v465
    %1900 = vmatpush1.msra.mxu0 %v464
    %1901 = vmatprep.subr.mxu0 %v461
    %1902 = vmatpush1.msra.mxu0 %v460
    %1903 = vmatprep.subr.mxu0 %v457
    %1904 = vmatpush1.msra.mxu0 %v456
    %1905 = vmatprep.subr.mxu0 %v453
    %1906 = vmatpush1.msra.mxu0 %v452
    %1907 = vmatprep.subr.mxu0 %v449
    %1908 = vmatpush1.msra.mxu0 %v448
    %1909 = vmatprep.subr.mxu0 %v445
    %1910 = vmatpush1.msra.mxu0 %v444
    %1911 = vmatprep.subr.mxu0 %v441
    %1912 = vmatpush1.msra.mxu0 %v440
    %1913 = vmatprep.subr.mxu0 0.0
    %1914 = vmatpush2.msra.mxu0 0.0
    %1915 = vmatprep.subr.mxu0 0.0
    %1916 = vmatpush2.msra.mxu0 0.0
    %1917 = vmatprep.subr.mxu0 0.0
    %1918 = vmatpush2.msra.mxu0 0.0
    %1919 = vmatprep.subr.mxu0 0.0
    %1920 = vmatpush2.msra.mxu0 0.0
    %1921 = vmatprep.subr.mxu0 0.0
    %1922 = vmatpush2.msra.mxu0 0.0
    %1923 = vmatprep.subr.mxu0 0.0
    %1924 = vmatpush2.msra.mxu0 0.0
    %1925 = vmatprep.subr.mxu0 0.0
    %1926 = vmatpush2.msra.mxu0 0.0
    %1927 = vmatprep.subr.mxu0 0.0
    %1928 = vmatpush2.msra.mxu0 0.0
    %1929 = vmatprep.subr.mxu0 0.0
    %1930 = vmatpush2.msra.mxu0 0.0
    %1931 = vmatprep.subr.mxu0 0.0
    %1932 = vmatpush2.msra.mxu0 0.0
    %1933 = vmatprep.subr.mxu0 0.0
    %1934 = vmatpush2.msra.mxu0 0.0
    %1935 = vmatprep.subr.mxu0 0.0
    %1936 = vmatpush2.msra.mxu0 0.0
    %1937 = vmatprep.subr.mxu0 0.0
    %1938 = vmatpush2.msra.mxu0 0.0
    %1939 = vmatprep.subr.mxu0 0.0
    %1940 = vmatpush2.msra.mxu0 0.0
    %1941 = vmatprep.subr.mxu0 0.0
    %1942 = vmatpush2.msra.mxu0 0.0
    %1943 = vmatprep.subr.mxu0 0.0
    %1944 = vmatpush2.msra.mxu0 0.0
    %1945 = vmatprep.mubr.f32.mxu0 0.0
    %1946 = vmatmul.mubr.f32.gmra.mxu0 %v1801
    %v1947 = vpop.f32.mrf.mxu0
    %v1948 = vadd.f32 0.0, %v1947
    %v1949 = vpop.f32.mrf.mxu0
    %v1950 = vadd.f32 0.0, %v1949
    %1951 = vdwg.mxu0
    %v1952 = vadd.f32 %v1806, %v1877
    %v1953 = vadd.f32 %v1807, %v1879
    %v1954 = vadd.f32 %v1808, %v1948
    %v1955 = vadd.f32 %v1809, %v1950
    %v1956 = vadd.f32 %v1952, %v665
    %v1957 = vadd.f32 %v1953, %v669
    %v1958 = vadd.f32 %v1954, %v673
    %v1959 = vadd.f32 %v1955, %v677
    %v1960 = vxor.u32 %v1956, 2147483648
    %v1961 = vxor.u32 %v1957, 2147483648
    %v1962 = vxor.u32 %v1958, 2147483648
    %v1963 = vmul.f32 %v1960, 1.442695
    %v1964 = vpow.pop %v1963
    %v1965 = vmul.f32 %v1961, 1.442695
    %v1966 = vpow.pop %v1965
    %v1967 = vmul.f32 %v1962, 1.442695
    %v1968 = vpow.pop %v1967
    %v1969 = vadd.f32 %v1964, 1.0
    %v1970 = vadd.f32 %v1966, 1.0
    %v1971 = vadd.f32 %v1968, 1.0
    %v1972 = vrcp.pop %v1969
    %v1973 = vmul.f32 1.0, %v1972
    %v1974 = vrcp.pop %v1970
    %v1975 = vmul.f32 1.0, %v1974
    %v1976 = vrcp.pop %v1971
    %v1977 = vmul.f32 1.0, %v1976
    %v1978 = vtanh.pop %v1959
    %v1979 = vmul.f32 %v1975, %v1799
    %v1980 = vmul.f32 %v1973, %v1978
    %v1981 = vadd.f32 %v1979, %v1980
    %v1982 = vtanh.pop %v1981
    %v1983 = vmul.f32 %v1977, %v1982
    %v1984 = vadd.f32 %v1802, %v1983
    %v1985 = vmul.f32 %v507, 0.125
    %v1986 = vsub.f32 1.0, %v507
    %v1987 = vmul.f32 %v1986, 0.125
    %v1988 = vadd.f32 %v1985, %v1987
    %v1989 = vmul.f32 %v1984, %v1988
    %1991 = vrot.lane.b32.xlu0 %v1989, 64
    %v1992 = vpop.permute.xlu0 %1991
    %v1993 = vld [vmem:[#allocation7] sm:$0xff]
    %v1994 = vld [vmem:[#allocation7 + $0x8] sm:$0xff]
    %v1995 = vld [vmem:[#allocation7 + $0x10] sm:$0xff]
    %v1996 = vld [vmem:[#allocation7 + $0x18] sm:$0xff]
    %v1997 = vld [vmem:[#allocation7 + $0x20] sm:$0xff]
    %v1998 = vld [vmem:[#allocation7 + $0x28] sm:$0xff]
    %v1999 = vld [vmem:[#allocation7 + $0x30] sm:$0xff]
    %v2000 = vld [vmem:[#allocation7 + $0x38] sm:$0xff]
    %v2001 = vld [vmem:[#allocation7 + $0x40] sm:$0xff]
    %v2002 = vld [vmem:[#allocation7 + $0x48] sm:$0xff]
    %v2003 = vld [vmem:[#allocation7 + $0x50] sm:$0xff]
    %v2004 = vld [vmem:[#allocation7 + $0x58] sm:$0xff]
    %v2005 = vld [vmem:[#allocation7 + $0x60] sm:$0xff]
    %v2006 = vld [vmem:[#allocation7 + $0x68] sm:$0xff]
    %v2007 = vld [vmem:[#allocation7 + $0x70] sm:$0xff]
    %v2008 = vld [vmem:[#allocation7 + $0x78] sm:$0xff]
    %v2009 = vld [vmem:[%s5] sm:$0x3]
    %v2011 = vlaneseq
    %v2012 = vshrl.u32 %v2011, 7
    %v2013 = vsub.s32 0, %v2012
    %v2014 = vrot.slane %v2009, %v2013
    %v2015 = vlaneseq
    %v2016 = vshrl.u32 %v2015, 7
    %v2017 = vsub.s32 1, %v2016
    %v2018 = vrot.slane %v2009, %v2017
    %vm2021 = vcmask 523264
    %v2022 = vsel %vm2021, %v1989, 0
    %v2024 = vsel %vm2021, %v1992, 0
    %2026 = vmatprep.subr.mxu0 0.0
    %2027 = vmatpush1.msra.mxu0 0.0
    %2028 = vmatprep.subr.mxu0 0.0
    %2029 = vmatpush1.msra.mxu0 0.0
    %2030 = vmatprep.subr.mxu0 0.0
    %2031 = vmatpush1.msra.mxu0 0.0
    %2032 = vmatprep.subr.mxu0 0.0
    %2033 = vmatpush1.msra.mxu0 0.0
    %2034 = vmatprep.subr.mxu0 0.0
    %2035 = vmatpush1.msra.mxu0 0.0
    %2036 = vmatprep.subr.mxu0 0.0
    %2037 = vmatpush1.msra.mxu0 0.0
    %2038 = vmatprep.subr.mxu0 0.0
    %2039 = vmatpush1.msra.mxu0 0.0
    %2040 = vmatprep.subr.mxu0 0.0
    %2041 = vmatpush1.msra.mxu0 0.0
    %2042 = vmatprep.subr.mxu0 %v2008
    %2043 = vmatpush1.msra.mxu0 %v2007
    %2044 = vmatprep.subr.mxu0 %v2006
    %2045 = vmatpush1.msra.mxu0 %v2005
    %2046 = vmatprep.subr.mxu0 %v2004
    %2047 = vmatpush1.msra.mxu0 %v2003
    %2048 = vmatprep.subr.mxu0 %v2002
    %2049 = vmatpush1.msra.mxu0 %v2001
    %2050 = vmatprep.subr.mxu0 %v2000
    %2051 = vmatpush1.msra.mxu0 %v1999
    %2052 = vmatprep.subr.mxu0 %v1998
    %2053 = vmatpush1.msra.mxu0 %v1997
    %2054 = vmatprep.subr.mxu0 %v1996
    %2055 = vmatpush1.msra.mxu0 %v1995
    %2056 = vmatprep.subr.mxu0 %v1994
    %2057 = vmatpush1.msra.mxu0 %v1993
    %2058 = vmatprep.subr.mxu0 0.0
    %2059 = vmatpush2.msra.mxu0 0.0
    %2060 = vmatprep.subr.mxu0 0.0
    %2061 = vmatpush2.msra.mxu0 0.0
    %2062 = vmatprep.subr.mxu0 0.0
    %2063 = vmatpush2.msra.mxu0 0.0
    %2064 = vmatprep.subr.mxu0 0.0
    %2065 = vmatpush2.msra.mxu0 0.0
    %2066 = vmatprep.subr.mxu0 0.0
    %2067 = vmatpush2.msra.mxu0 0.0
    %2068 = vmatprep.subr.mxu0 0.0
    %2069 = vmatpush2.msra.mxu0 0.0
    %2070 = vmatprep.subr.mxu0 0.0
    %2071 = vmatpush2.msra.mxu0 0.0
    %2072 = vmatprep.subr.mxu0 0.0
    %2073 = vmatpush2.msra.mxu0 0.0
    %2074 = vmatprep.subr.mxu0 0.0
    %2075 = vmatpush2.msra.mxu0 0.0
    %2076 = vmatprep.subr.mxu0 0.0
    %2077 = vmatpush2.msra.mxu0 0.0
    %2078 = vmatprep.subr.mxu0 0.0
    %2079 = vmatpush2.msra.mxu0 0.0
    %2080 = vmatprep.subr.mxu0 0.0
    %2081 = vmatpush2.msra.mxu0 0.0
    %2082 = vmatprep.subr.mxu0 0.0
    %2083 = vmatpush2.msra.mxu0 0.0
    %2084 = vmatprep.subr.mxu0 0.0
    %2085 = vmatpush2.msra.mxu0 0.0
    %2086 = vmatprep.subr.mxu0 0.0
    %2087 = vmatpush2.msra.mxu0 0.0
    %2088 = vmatprep.subr.mxu0 0.0
    %2089 = vmatpush2.msra.mxu0 0.0
    %2090 = vmatprep.mubr.f32.mxu0 0.0
    %2091 = vmatmul.mubr.f32.gmra.mxu0 %v2022
    %v2092 = vpop.f32.mrf.mxu0
    %v2093 = vadd.f32 %v2014, %v2092
    %v2094 = vpop.f32.mrf.mxu0
    %v2095 = vadd.f32 %v2018, %v2094
    %2096 = vmatprep.mubr.f32.mxu0 0.0
    %2097 = vmatmul.mubr.f32.gmra.mxu0 %v2024
    %v2098 = vpop.f32.mrf.mxu0
    %v2099 = vadd.f32 %v2014, %v2098
    %v2100 = vpop.f32.mrf.mxu0
    %v2101 = vadd.f32 %v2018, %v2100
    %2102 = vdwg.mxu0
    %2104 = vrot.lane.b32.xlu0 %v2093, 64
    %v2105 = vpop.permute.xlu0 %2104
    %v2107 = vmul.f32 %v2093, %v2105
    %v2108 = vmul.f32 %v2099, %v2105
    %vm2109 = vcmask 261120
    %v2110 = vsel %vm2109, %v2107, 0.0
    %2111 = vadd.xlane.f32.xlu0 %v2110
    %v2112 = vpop.xlane.xlu0 %2111
    %v2113 = vsel %vm2109, %v2108, 0.0
    %2114 = vadd.xlane.f32.xlu0 %v2113
    %v2115 = vpop.xlane.xlu0 %2114
    %v2116 = vmul.f32 %v2112, 0.17677669
    %v2117 = vmul.f32 %v2115, 0.17677669
    %2119 = vrot.lane.b32.xlu0 %v2099, 64
    %v2120 = vpop.permute.xlu0 %2119
    %v2122 = vmul.f32 %v2093, %v2120
    %v2123 = vmul.f32 %v2099, %v2120
    %v2124 = vsel %vm2109, %v2122, 0.0
    %2125 = vadd.xlane.f32.xlu0 %v2124
    %v2126 = vpop.xlane.xlu0 %2125
    %v2127 = vsel %vm2109, %v2123, 0.0
    %2128 = vadd.xlane.f32.xlu0 %v2127
    %v2129 = vpop.xlane.xlu0 %2128
    %v2130 = vmul.f32 %v2126, 0.17677669
    %v2131 = vmul.f32 %v2129, 0.17677669
    %v2132 = vmax.f32 %v2116, %v2130
    %v2133 = vmax.f32 %v2117, %v2131
    %v2134 = vsub.f32 %v2116, %v2132
    %v2135 = vsub.f32 %v2117, %v2133
    %v2136 = vmul.f32 %v2134, 1.442695
    %v2137 = vpow.pop %v2136
    %v2138 = vmul.f32 %v2135, 1.442695
    %v2139 = vpow.pop %v2138
    %v2140 = vsub.f32 %v2130, %v2132
    %v2141 = vsub.f32 %v2131, %v2133
    %v2142 = vmul.f32 %v2140, 1.442695
    %v2143 = vpow.pop %v2142
    %v2144 = vmul.f32 %v2141, 1.442695
    %v2145 = vpow.pop %v2144
    %v2146 = vadd.f32 %v2137, %v2143
    %v2147 = vadd.f32 %v2139, %v2145
    %v2148 = vrcp.pop %v2146
    %v2149 = vmul.f32 1.0, %v2148
    %v2150 = vrcp.pop %v2147
    %v2151 = vmul.f32 1.0, %v2150
    %v2152 = vmul.f32 %v2137, %v2095
    %v2153 = vmul.f32 %v2139, %v2095
    %v2154 = vmul.f32 %v2143, %v2101
    %v2155 = vmul.f32 %v2145, %v2101
    %v2156 = vadd.f32 %v2152, %v2154
    %v2157 = vadd.f32 %v2153, %v2155
    %v2158 = vmul.f32 %v2156, %v2149
    %v2159 = vmul.f32 %v2157, %v2151
    %2162 = vrot.lane.b32.xlu0 %v2107, 96
    %v2163 = vpop.permute.xlu0 %2162
    %2164 = vrot.lane.b32.xlu0 %v2108, 96
    %v2165 = vpop.permute.xlu0 %2164
    %v2168 = vsel %vm2109, %v2163, 0.0
    %2169 = vadd.xlane.f32.xlu0 %v2168
    %v2170 = vpop.xlane.xlu0 %2169
    %v2171 = vsel %vm2109, %v2165, 0.0
    %2172 = vadd.xlane.f32.xlu0 %v2171
    %v2173 = vpop.xlane.xlu0 %2172
    %v2174 = vmul.f32 %v2170, 0.17677669
    %v2175 = vmul.f32 %v2173, 0.17677669
    %2178 = vrot.lane.b32.xlu0 %v2122, 96
    %v2179 = vpop.permute.xlu0 %2178
    %2180 = vrot.lane.b32.xlu0 %v2123, 96
    %v2181 = vpop.permute.xlu0 %2180
    %v2184 = vsel %vm2109, %v2179, 0.0
    %2185 = vadd.xlane.f32.xlu0 %v2184
    %v2186 = vpop.xlane.xlu0 %2185
    %v2187 = vsel %vm2109, %v2181, 0.0
    %2188 = vadd.xlane.f32.xlu0 %v2187
    %v2189 = vpop.xlane.xlu0 %2188
    %v2190 = vmul.f32 %v2186, 0.17677669
    %v2191 = vmul.f32 %v2189, 0.17677669
    %v2192 = vmax.f32 %v2174, %v2190
    %v2193 = vmax.f32 %v2175, %v2191
    %v2194 = vsub.f32 %v2174, %v2192
    %v2195 = vsub.f32 %v2175, %v2193
    %v2196 = vmul.f32 %v2194, 1.442695
    %v2197 = vpow.pop %v2196
    %v2198 = vmul.f32 %v2195, 1.442695
    %v2199 = vpow.pop %v2198
    %v2200 = vsub.f32 %v2190, %v2192
    %v2201 = vsub.f32 %v2191, %v2193
    %v2202 = vmul.f32 %v2200, 1.442695
    %v2203 = vpow.pop %v2202
    %v2204 = vmul.f32 %v2201, 1.442695
    %v2205 = vpow.pop %v2204
    %v2206 = vadd.f32 %v2197, %v2203
    %v2207 = vadd.f32 %v2199, %v2205
    %v2208 = vrcp.pop %v2206
    %v2209 = vmul.f32 1.0, %v2208
    %v2210 = vrcp.pop %v2207
    %v2211 = vmul.f32 1.0, %v2210
    %v2212 = vmul.f32 %v2197, %v2095
    %v2213 = vmul.f32 %v2199, %v2095
    %v2214 = vmul.f32 %v2203, %v2101
    %v2215 = vmul.f32 %v2205, %v2101
    %v2216 = vadd.f32 %v2212, %v2214
    %v2217 = vadd.f32 %v2213, %v2215
    %v2218 = vmul.f32 %v2216, %v2209
    %v2219 = vmul.f32 %v2217, %v2211
    %v2220 = vsel %vm2109, %v2158, %v2218
    %v2221 = vsel %vm2109, %v2159, %v2219
    %v2222 = vld [vmem:[#allocation8] sm:$0xff]
    %v2223 = vld [vmem:[#allocation8 + $0x8] sm:$0xff]
    %v2224 = vld [vmem:[#allocation8 + $0x10] sm:$0xff]
    %v2225 = vld [vmem:[#allocation8 + $0x18] sm:$0xff]
    %v2226 = vld [vmem:[#allocation8 + $0x20] sm:$0xff]
    %v2227 = vld [vmem:[#allocation8 + $0x28] sm:$0xff]
    %v2228 = vld [vmem:[#allocation8 + $0x30] sm:$0xff]
    %v2229 = vld [vmem:[#allocation8 + $0x38] sm:$0xff]
    %v2230 = vld [vmem:[%s7] sm:$0x1]
    %v2232 = vlaneseq
    %v2233 = vshrl.u32 %v2232, 7
    %v2234 = vsub.s32 0, %v2233
    %v2235 = vrot.slane %v2230, %v2234
    %v2238 = vsel %vm2021, %v2220, 0
    %v2241 = vsel %vm2021, %v2221, 0
    %2243 = vmatprep.subr.mxu0 0.0
    %2244 = vmatpush1.msra.mxu0 0.0
    %2245 = vmatprep.subr.mxu0 0.0
    %2246 = vmatpush1.msra.mxu0 0.0
    %2247 = vmatprep.subr.mxu0 0.0
    %2248 = vmatpush1.msra.mxu0 0.0
    %2249 = vmatprep.subr.mxu0 0.0
    %2250 = vmatpush1.msra.mxu0 0.0
    %2251 = vmatprep.subr.mxu0 0.0
    %2252 = vmatpush1.msra.mxu0 0.0
    %2253 = vmatprep.subr.mxu0 0.0
    %2254 = vmatpush1.msra.mxu0 0.0
    %2255 = vmatprep.subr.mxu0 0.0
    %2256 = vmatpush1.msra.mxu0 0.0
    %2257 = vmatprep.subr.mxu0 0.0
    %2258 = vmatpush1.msra.mxu0 0.0
    %2259 = vmatprep.subr.mxu0 0.0
    %2260 = vmatpush1.msra.mxu0 %v2229
    %2261 = vmatprep.subr.mxu0 0.0
    %2262 = vmatpush1.msra.mxu0 %v2228
    %2263 = vmatprep.subr.mxu0 0.0
    %2264 = vmatpush1.msra.mxu0 %v2227
    %2265 = vmatprep.subr.mxu0 0.0
    %2266 = vmatpush1.msra.mxu0 %v2226
    %2267 = vmatprep.subr.mxu0 0.0
    %2268 = vmatpush1.msra.mxu0 %v2225
    %2269 = vmatprep.subr.mxu0 0.0
    %2270 = vmatpush1.msra.mxu0 %v2224
    %2271 = vmatprep.subr.mxu0 0.0
    %2272 = vmatpush1.msra.mxu0 %v2223
    %2273 = vmatprep.subr.mxu0 0.0
    %2274 = vmatpush1.msra.mxu0 %v2222
    %2275 = vmatprep.subr.mxu0 0.0
    %2276 = vmatpush2.msra.mxu0 0.0
    %2277 = vmatprep.subr.mxu0 0.0
    %2278 = vmatpush2.msra.mxu0 0.0
    %2279 = vmatprep.subr.mxu0 0.0
    %2280 = vmatpush2.msra.mxu0 0.0
    %2281 = vmatprep.subr.mxu0 0.0
    %2282 = vmatpush2.msra.mxu0 0.0
    %2283 = vmatprep.subr.mxu0 0.0
    %2284 = vmatpush2.msra.mxu0 0.0
    %2285 = vmatprep.subr.mxu0 0.0
    %2286 = vmatpush2.msra.mxu0 0.0
    %2287 = vmatprep.subr.mxu0 0.0
    %2288 = vmatpush2.msra.mxu0 0.0
    %2289 = vmatprep.subr.mxu0 0.0
    %2290 = vmatpush2.msra.mxu0 0.0
    %2291 = vmatprep.subr.mxu0 0.0
    %2292 = vmatpush2.msra.mxu0 0.0
    %2293 = vmatprep.subr.mxu0 0.0
    %2294 = vmatpush2.msra.mxu0 0.0
    %2295 = vmatprep.subr.mxu0 0.0
    %2296 = vmatpush2.msra.mxu0 0.0
    %2297 = vmatprep.subr.mxu0 0.0
    %2298 = vmatpush2.msra.mxu0 0.0
    %2299 = vmatprep.subr.mxu0 0.0
    %2300 = vmatpush2.msra.mxu0 0.0
    %2301 = vmatprep.subr.mxu0 0.0
    %2302 = vmatpush2.msra.mxu0 0.0
    %2303 = vmatprep.subr.mxu0 0.0
    %2304 = vmatpush2.msra.mxu0 0.0
    %2305 = vmatprep.subr.mxu0 0.0
    %2306 = vmatpush2.msra.mxu0 0.0
    %2307 = vmatprep.mubr.f32.mxu0 0.0
    %2308 = vmatmul.mubr.f32.gmra.mxu0 %v2238
    %v2309 = vpop.f32.mrf.mxu0
    %v2310 = vadd.f32 %v2235, %v2309
    %v2311 = vpop.f32.mrf.mxu0
    %2312 = vmatprep.mubr.f32.mxu0 0.0
    %2313 = vmatmul.mubr.f32.gmra.mxu0 %v2241
    %v2314 = vpop.f32.mrf.mxu0
    %v2315 = vadd.f32 %v2235, %v2314
    %v2316 = vpop.f32.mrf.mxu0
    %2317 = vdwg.mxu0
    %v2318 = vadd.f32 %v2310, %v2315
    %v2319 = vmul.f32 %v2318, 0.5
    %v2320 = vld [vmem:[%s8] sm:$0xff]
    %v2321 = vld [vmem:[%s8 + $0x8] sm:$0xff]
    %v2322 = vld [vmem:[%s8 + $0x10] sm:$0xff]
    %v2323 = vld [vmem:[%s8 + $0x18] sm:$0xff]
    %v2324 = vld [vmem:[%s8 + $0x20] sm:$0xff]
    %v2325 = vld [vmem:[%s8 + $0x28] sm:$0xff]
    %v2326 = vld [vmem:[%s8 + $0x30] sm:$0xff]
    %v2327 = vld [vmem:[%s8 + $0x38] sm:$0xff]
    %v2328 = vld [vmem:[%s9] sm:$0x1]
    %v2330 = vlaneseq
    %v2331 = vshrl.u32 %v2330, 7
    %v2332 = vsub.s32 0, %v2331
    %v2333 = vrot.slane %v2328, %v2332
    %v2336 = vsel %vm2021, %v2319, 0
    %2338 = vmatprep.subr.mxu0 0.0
    %2339 = vmatpush1.msra.mxu0 0.0
    %2340 = vmatprep.subr.mxu0 0.0
    %2341 = vmatpush1.msra.mxu0 0.0
    %2342 = vmatprep.subr.mxu0 0.0
    %2343 = vmatpush1.msra.mxu0 0.0
    %2344 = vmatprep.subr.mxu0 0.0
    %2345 = vmatpush1.msra.mxu0 0.0
    %2346 = vmatprep.subr.mxu0 0.0
    %2347 = vmatpush1.msra.mxu0 0.0
    %2348 = vmatprep.subr.mxu0 0.0
    %2349 = vmatpush1.msra.mxu0 0.0
    %2350 = vmatprep.subr.mxu0 0.0
    %2351 = vmatpush1.msra.mxu0 0.0
    %2352 = vmatprep.subr.mxu0 0.0
    %2353 = vmatpush1.msra.mxu0 0.0
    %2354 = vmatprep.subr.mxu0 0.0
    %2355 = vmatpush1.msra.mxu0 %v2327
    %2356 = vmatprep.subr.mxu0 0.0
    %2357 = vmatpush1.msra.mxu0 %v2326
    %2358 = vmatprep.subr.mxu0 0.0
    %2359 = vmatpush1.msra.mxu0 %v2325
    %2360 = vmatprep.subr.mxu0 0.0
    %2361 = vmatpush1.msra.mxu0 %v2324
    %2362 = vmatprep.subr.mxu0 0.0
    %2363 = vmatpush1.msra.mxu0 %v2323
    %2364 = vmatprep.subr.mxu0 0.0
    %2365 = vmatpush1.msra.mxu0 %v2322
    %2366 = vmatprep.subr.mxu0 0.0
    %2367 = vmatpush1.msra.mxu0 %v2321
    %2368 = vmatprep.subr.mxu0 0.0
    %2369 = vmatpush1.msra.mxu0 %v2320
    %2370 = vmatprep.subr.mxu0 0.0
    %2371 = vmatpush2.msra.mxu0 0.0
    %2372 = vmatprep.subr.mxu0 0.0
    %2373 = vmatpush2.msra.mxu0 0.0
    %2374 = vmatprep.subr.mxu0 0.0
    %2375 = vmatpush2.msra.mxu0 0.0
    %2376 = vmatprep.subr.mxu0 0.0
    %2377 = vmatpush2.msra.mxu0 0.0
    %2378 = vmatprep.subr.mxu0 0.0
    %2379 = vmatpush2.msra.mxu0 0.0
    %2380 = vmatprep.subr.mxu0 0.0
    %2381 = vmatpush2.msra.mxu0 0.0
    %2382 = vmatprep.subr.mxu0 0.0
    %2383 = vmatpush2.msra.mxu0 0.0
    %2384 = vmatprep.subr.mxu0 0.0
    %2385 = vmatpush2.msra.mxu0 0.0
    %2386 = vmatprep.subr.mxu0 0.0
    %2387 = vmatpush2.msra.mxu0 0.0
    %2388 = vmatprep.subr.mxu0 0.0
    %2389 = vmatpush2.msra.mxu0 0.0
    %2390 = vmatprep.subr.mxu0 0.0
    %2391 = vmatpush2.msra.mxu0 0.0
    %2392 = vmatprep.subr.mxu0 0.0
    %2393 = vmatpush2.msra.mxu0 0.0
    %2394 = vmatprep.subr.mxu0 0.0
    %2395 = vmatpush2.msra.mxu0 0.0
    %2396 = vmatprep.subr.mxu0 0.0
    %2397 = vmatpush2.msra.mxu0 0.0
    %2398 = vmatprep.subr.mxu0 0.0
    %2399 = vmatpush2.msra.mxu0 0.0
    %2400 = vmatprep.subr.mxu0 0.0
    %2401 = vmatpush2.msra.mxu0 0.0
    %2402 = vmatprep.mubr.f32.mxu0 0.0
    %2403 = vmatmul.mubr.f32.gmra.mxu0 %v2336
    %v2404 = vpop.f32.mrf.mxu0
    %v2405 = vadd.f32 %v2333, %v2404
    %v2406 = vpop.f32.mrf.mxu0
    %2407 = vdwg.mxu0
    %vm2408 = vcmask 15360
    %2409 = vst.msk [vmem:[%s10] sm:$0xff] %vm2408, %v2405
    // Predicated region
    $region58: #{tpu_custom_call.1} parent=1 // pred_check
      _
    $region59: #{tpu_custom_call.1} parent=1 // pred_check_branch
      %2411 = sbr.rel (0) target = $region61
    $region60: #{tpu_custom_call.1} parent=1 // pred_region
      _
    $region61: #{tpu_custom_call.1} parent=1 // pred_fallthru
      _
    // Predicated region
    $region62: #{tpu_custom_call.1} parent=1 // pred_check
      _
    $region63: #{tpu_custom_call.1} parent=1 // pred_check_branch
      %2413 = sbr.rel (0) target = $region65
    $region64: #{tpu_custom_call.1} parent=1 // pred_region
      _
    $region65: #{tpu_custom_call.1} parent=1 // pred_fallthru
      _
    %2414 = vsyncpa [#allocation4], 1
    %2415 = vsyncpa [#allocation6], 1
    %2416 = vsyncpa [#allocation9], 1

</llo_original>
